<compile_context>
chip_gen: v7x
topology: tpu7x:2x2x1
jax: 0.10.0
libtpu: 0.0.40
codegen_flags: <defaults>
</compile_context>

<pallas_src>
import functools

import jax
import jax.numpy as jnp
from jax.experimental import pallas as pl
from jax.experimental.pallas import tpu as pltpu


def _attention_kernel(x_ref, wqkv_ref, bqkv_ref, wproj_ref, bproj_ref, o_ref,
                      *, B, N, heads, scale, mxu_dtype):
    C = x_ref.shape[-1]
    hd = C // heads
    G = B * heads
    BN = B * N

    x = x_ref[...].astype(mxu_dtype)          # (BN, C)
    wqkv = wqkv_ref[...].astype(mxu_dtype)    # (C, 3C)

    # ---- Fused QKV projection: one (BN, C) @ (C, 3C) MXU matmul, f32 accumulation.
    qkv = jnp.dot(x, wqkv, preferred_element_type=jnp.float32) + bqkv_ref[...]  # (BN, 3C) f32

    # ---- One layout transform: (BN, 3C) -> (3, G, N, hd) with g = h*B + b.
    # Column order of qkv is (j, h, d) with j in {q,k,v}, so reshaping the lane
    # dim to (3*H, hd), swapping the row dim with the (3*H) dim (minor dim hd is
    # preserved) and splitting gives q/k/v each as a (G, N, hd) batch for the
    # MXU; no per-head lane slices.
    qkv_g = jnp.transpose(qkv.reshape(BN, 3 * heads, hd), (1, 0, 2))  # (3H, BN, hd)
    qkv_g = qkv_g.reshape(3, G, N, hd)                                # (3, G, N, hd)
    q = (qkv_g[0] * scale).astype(mxu_dtype)   # scale folded into q: O(G*N*hd)
    k = qkv_g[1].astype(mxu_dtype)
    v = qkv_g[2].astype(mxu_dtype)

    # ---- Scores: one batched contraction over g = B*heads, no k transpose.
    s = jnp.einsum('gnd,gmd->gnm', q, k,
                   preferred_element_type=jnp.float32)                # (G, N, N) f32

    # ---- Softmax (f32 on VPU/EUP).  Exact reciprocal on the tiny (G, N, 1)
    # denominator; the O(N^2) normalization is a single multiply.
    s = s - jnp.max(s, axis=-1, keepdims=True)
    p = jnp.exp(s)
    inv = pl.reciprocal(jnp.sum(p, axis=-1, keepdims=True))           # (G, N, 1)
    p = p * inv

    # ---- P @ V, batched over g.
    o = jnp.einsum('gnm,gmd->gnd', p.astype(mxu_dtype), v,
                   preferred_element_type=jnp.float32)                # (G, N, hd) f32

    # ---- Inverse layout transform: (G=H*B, N, hd) -> (BN, H, hd) -> (BN, C).
    o2 = jnp.transpose(o.reshape(heads, BN, hd), (1, 0, 2)).reshape(BN, C)

    # ---- Single K=C output projection + bias (one MXU push/drain).
    out = jnp.dot(o2.astype(mxu_dtype), wproj_ref[...].astype(mxu_dtype),
                  preferred_element_type=jnp.float32) + bproj_ref[...]
    o_ref[...] = out.astype(o_ref.dtype)


def attention_2(x, wqkv, bqkv, wproj, bproj, *, heads, mxu_dtype=jnp.float32):
    """x: (B, N, C).  Returns (B, N, C) (eval-mode forward).

    mxu_dtype: dtype of MXU operands (jnp.bfloat16 recommended on v6e/v7x at
    production shapes); accumulation and softmax stay in f32.
    """
    B, N, C = x.shape
    assert C % heads == 0
    scale = (C // heads) ** (-0.5)

    # Fuse batch into the matmul M dimension; output is a dense (B*N, C) slab.
    x2d = x.reshape(B * N, C)

    kernel = functools.partial(_attention_kernel, B=B, N=N, heads=heads,
                               scale=scale, mxu_dtype=mxu_dtype)

    out2d = pl.pallas_call(
        kernel,
        out_shape=jax.ShapeDtypeStruct((B * N, C), x.dtype),
        # Single grid step: the whole problem fits in VMEM and a finer grid of
        # microscopic steps would be dominated by per-step pipeline overhead.
        # All blocks are full arrays, so the (8,128) block-shape divisibility
        # constraint does not apply.
        # TODO(synk): at production N, make the leading axis a "parallel"
        # query-tile axis (v7x has 2 TensorCores) and add a trailing
        # "arbitrary" KV axis with an online-softmax recurrence.
        grid=(1,),
        in_specs=[
            pl.BlockSpec((B * N, C), lambda i: (0, 0)),       # x (dense slab)
            pl.BlockSpec((C, 3 * C), lambda i: (0, 0)),       # Wqkv (grid-invariant)
            pl.BlockSpec((1, 3 * C), lambda i: (0, 0)),       # bqkv
            pl.BlockSpec((C, C), lambda i: (0, 0)),           # Wproj
            pl.BlockSpec((1, C), lambda i: (0, 0)),           # bproj
        ],
        out_specs=pl.BlockSpec((B * N, C), lambda i: (0, 0)),
        compiler_params=pltpu.CompilerParams(
            dimension_semantics=("arbitrary",)),
    )(x2d, wqkv, bqkv, wproj, bproj)

    return out2d.reshape(B, N, C)


def _reference(x, wqkv, bqkv, wproj, bproj, heads):
    B, N, C = x.shape
    hd = C // heads
    scale = hd ** (-0.5)
    qkv = x @ wqkv + bqkv                                   # (B, N, 3C)
    qkv = qkv.reshape(B, N, 3, heads, hd).transpose(2, 0, 3, 1, 4)
    q, k, v = qkv[0], qkv[1], qkv[2]                        # (B, H, N, hd)
    attn = (q @ jnp.swapaxes(k, -2, -1)) * scale
    attn = jax.nn.softmax(attn, axis=-1)
    out = (attn @ v).transpose(0, 2, 1, 3).reshape(B, N, C)
    return out @ wproj + bproj


if __name__ == "__main__":
    # Small shapes consistent with the module's forward: x is (B, N, C).
    B, N, C, heads = 2, 8, 32, 4
    dropout = 0.1  # unused (eval mode)

    key = jax.random.PRNGKey(0)
    kx, kwq, kbq, kwp, kbp = jax.random.split(key, 5)

    x = jax.random.normal(kx, (B, N, C), dtype=jnp.float32)
    # Deterministic parameter init (shapes from nn.Linear(dim, dim*3) / nn.Linear(dim, dim)).
    wqkv = jax.random.normal(kwq, (C, 3 * C), dtype=jnp.float32) * (1.0 / jnp.sqrt(C))
    bqkv = jax.random.normal(kbq, (1, 3 * C), dtype=jnp.float32) * 0.02
    wproj = jax.random.normal(kwp, (C, C), dtype=jnp.float32) * (1.0 / jnp.sqrt(C))
    bproj = jax.random.normal(kbp, (1, C), dtype=jnp.float32) * 0.02

    ref = _reference(x, wqkv, bqkv, wproj, bproj, heads)

    # f32 MXU operands: exact path, tight tolerance.
    out = attention_2(x, wqkv, bqkv, wproj, bproj, heads=heads)
    out = jax.block_until_ready(out)
    assert out.shape == (B, N, C)
    assert jnp.allclose(out, ref, atol=1e-3, rtol=1e-3), "f32 kernel mismatch vs reference"

    # bf16 MXU operands (v6e/v7x-native path), f32 accumulation + f32 softmax.
    # Loose tolerance covers bf16 operand rounding.
    out_bf16 = attention_2(x, wqkv, bqkv, wproj, bproj, heads=heads,
                           mxu_dtype=jnp.bfloat16)
    out_bf16 = jax.block_until_ready(out_bf16)
    assert out_bf16.shape == (B, N, C)
    assert jnp.allclose(out_bf16, ref, atol=2.5e-1, rtol=1e-1), "bf16 kernel mismatch vs reference"

    print("KERNEL_OK")
</pallas_src>

<mosaic_0001>
module attributes {stable_mosaic.version = 11 : i64} {
  func.func @_attention_kernel(%arg0: i32, %arg1: memref<16x32xf32, #tpu.memory_space<vmem>>, %arg2: memref<32x96xf32, #tpu.memory_space<vmem>>, %arg3: memref<1x96xf32, #tpu.memory_space<vmem>>, %arg4: memref<32x32xf32, #tpu.memory_space<vmem>>, %arg5: memref<1x32xf32, #tpu.memory_space<vmem>>, %arg6: memref<16x32xf32, #tpu.memory_space<vmem>>) attributes {dimension_semantics = [#tpu.dimension_semantics<arbitrary>], iteration_bounds = array<i64: 1>, scalar_prefetch = 0 : i64, scratch_operands = 0 : i64, tpu.core_type = #tpu.core_type<tc>, window_params = [{pipeline_mode = #tpu.pipeline_mode<synchronous>, transform_indices = @transform_0, window_bounds = array<i64: 16, 32>}, {pipeline_mode = #tpu.pipeline_mode<synchronous>, transform_indices = @transform_1, window_bounds = array<i64: 32, 96>}, {pipeline_mode = #tpu.pipeline_mode<synchronous>, transform_indices = @transform_2, window_bounds = array<i64: 1, 96>}, {pipeline_mode = #tpu.pipeline_mode<synchronous>, transform_indices = @transform_3, window_bounds = array<i64: 32, 32>}, {pipeline_mode = #tpu.pipeline_mode<synchronous>, transform_indices = @transform_4, window_bounds = array<i64: 1, 32>}, {pipeline_mode = #tpu.pipeline_mode<synchronous>, transform_indices = @transform_5, window_bounds = array<i64: 16, 32>}]} {
    %c0 = arith.constant 0 : index
    %c0_0 = arith.constant 0 : index
    %0 = vector.load %arg1[%c0, %c0_0] : memref<16x32xf32, #tpu.memory_space<vmem>>, vector<16x32xf32>
    %c0_1 = arith.constant 0 : index
    %c0_2 = arith.constant 0 : index
    %1 = vector.load %arg2[%c0_1, %c0_2] : memref<32x96xf32, #tpu.memory_space<vmem>>, vector<32x96xf32>
    %cst = arith.constant dense<0.000000e+00> : vector<16x96xf32>
    %2 = tpu.matmul %0, %1, %cst {dimension_numbers = #tpu.dot_dimension_numbers<[1], [0], [0], [1], [0, 0, 1, 1], [], []>} : vector<16x32xf32>, vector<32x96xf32>, vector<16x96xf32> -> vector<16x96xf32>
    %c0_3 = arith.constant 0 : index
    %c0_4 = arith.constant 0 : index
    %3 = vector.load %arg3[%c0_3, %c0_4] : memref<1x96xf32, #tpu.memory_space<vmem>>, vector<1x96xf32>
    %4 = vector.broadcast %3 : vector<1x96xf32> to vector<16x96xf32>
    %5 = arith.addf %2, %4 : vector<16x96xf32>
    %6 = vector.shape_cast %5 : vector<16x96xf32> to vector<16x12x8xf32>
    %7 = tpu.transpose %6, [1, 0, 2] : vector<16x12x8xf32> -> vector<12x16x8xf32>
    %8 = vector.shape_cast %7 : vector<12x16x8xf32> to vector<3x8x8x8xf32>
    %9 = vector.extract_strided_slice %8 {offsets = [0, 0, 0, 0], sizes = [1, 8, 8, 8], strides = [1, 1, 1, 1]} : vector<3x8x8x8xf32> to vector<1x8x8x8xf32>
    %10 = vector.shape_cast %9 : vector<1x8x8x8xf32> to vector<8x8x8xf32>
    %cst_5 = arith.constant 0.353553385 : f32
    %11 = vector.broadcast %cst_5 : f32 to vector<8x8x8xf32>
    %12 = arith.mulf %10, %11 : vector<8x8x8xf32>
    %13 = vector.extract_strided_slice %8 {offsets = [1, 0, 0, 0], sizes = [1, 8, 8, 8], strides = [1, 1, 1, 1]} : vector<3x8x8x8xf32> to vector<1x8x8x8xf32>
    %14 = vector.shape_cast %13 : vector<1x8x8x8xf32> to vector<8x8x8xf32>
    %15 = vector.extract_strided_slice %8 {offsets = [2, 0, 0, 0], sizes = [1, 8, 8, 8], strides = [1, 1, 1, 1]} : vector<3x8x8x8xf32> to vector<1x8x8x8xf32>
    %16 = vector.shape_cast %15 : vector<1x8x8x8xf32> to vector<8x8x8xf32>
    "tpu.trace_start"() <{level = 10 : i32, message = "gnd,gmd->gnm"}> : () -> ()
    %cst_6 = arith.constant dense<0.000000e+00> : vector<8x8x8xf32>
    %17 = tpu.matmul %12, %14, %cst_6 {dimension_numbers = #tpu.dot_dimension_numbers<[2], [2], [1], [1], [0, 0, 0, 1, 1, 1], [0], [0]>} : vector<8x8x8xf32>, vector<8x8x8xf32>, vector<8x8x8xf32> -> vector<8x8x8xf32>
    "tpu.trace_stop"() : () -> ()
    %cst_7 = arith.constant dense<0xFF800000> : vector<8x8xf32>
    %18 = vector.multi_reduction <maximumf>, %17, %cst_7 [2] : vector<8x8x8xf32> to vector<8x8xf32>
    %19 = vector.shape_cast %18 : vector<8x8xf32> to vector<8x8x1xf32>
    %20 = vector.broadcast %19 : vector<8x8x1xf32> to vector<8x8x8xf32>
    %21 = arith.subf %17, %20 : vector<8x8x8xf32>
    %22 = math.exp %21 : vector<8x8x8xf32>
    %cst_8 = arith.constant dense<0.000000e+00> : vector<8x8xf32>
    %23 = vector.multi_reduction <add>, %22, %cst_8 [2] : vector<8x8x8xf32> to vector<8x8xf32>
    %24 = vector.shape_cast %23 : vector<8x8xf32> to vector<8x8x1xf32>
    %25 = tpu.reciprocal %24 : vector<8x8x1xf32> -> vector<8x8x1xf32>
    %26 = vector.broadcast %25 : vector<8x8x1xf32> to vector<8x8x8xf32>
    %27 = arith.mulf %22, %26 : vector<8x8x8xf32>
    "tpu.trace_start"() <{level = 10 : i32, message = "gnm,gmd->gnd"}> : () -> ()
    %cst_9 = arith.constant dense<0.000000e+00> : vector<8x8x8xf32>
    %28 = tpu.matmul %27, %16, %cst_9 {dimension_numbers = #tpu.dot_dimension_numbers<[2], [1], [1], [2], [0, 0, 0, 1, 1, 2], [0], [0]>} : vector<8x8x8xf32>, vector<8x8x8xf32>, vector<8x8x8xf32> -> vector<8x8x8xf32>
    "tpu.trace_stop"() : () -> ()
    %29 = vector.shape_cast %28 : vector<8x8x8xf32> to vector<4x16x8xf32>
    %30 = tpu.transpose %29, [1, 0, 2] : vector<4x16x8xf32> -> vector<16x4x8xf32>
    %31 = vector.shape_cast %30 : vector<16x4x8xf32> to vector<16x32xf32>
    %c0_10 = arith.constant 0 : index
    %c0_11 = arith.constant 0 : index
    %32 = vector.load %arg4[%c0_10, %c0_11] : memref<32x32xf32, #tpu.memory_space<vmem>>, vector<32x32xf32>
    %cst_12 = arith.constant dense<0.000000e+00> : vector<16x32xf32>
    %33 = tpu.matmul %31, %32, %cst_12 {dimension_numbers = #tpu.dot_dimension_numbers<[1], [0], [0], [1], [0, 0, 1, 1], [], []>} : vector<16x32xf32>, vector<32x32xf32>, vector<16x32xf32> -> vector<16x32xf32>
    %c0_13 = arith.constant 0 : index
    %c0_14 = arith.constant 0 : index
    %34 = vector.load %arg5[%c0_13, %c0_14] : memref<1x32xf32, #tpu.memory_space<vmem>>, vector<1x32xf32>
    %35 = vector.broadcast %34 : vector<1x32xf32> to vector<16x32xf32>
    %36 = arith.addf %33, %35 : vector<16x32xf32>
    %c0_15 = arith.constant 0 : index
    %c0_16 = arith.constant 0 : index
    %37 = vector.load %arg6[%c0_15, %c0_16] : memref<16x32xf32, #tpu.memory_space<vmem>>, vector<16x32xf32>
    tpu.vector_store %arg6[%c0_15, %c0_16], %36 {strides = array<i32>} : memref<16x32xf32, #tpu.memory_space<vmem>>, vector<16x32xf32>,
    return
  }
  func.func @transform_0(%arg0: i32) -> (i32, i32) {
    %c0_i32 = arith.constant 0 : i32
    %c0_i32_0 = arith.constant 0 : i32
    %c0_i32_1 = arith.constant 0 : i32
    return %c0_i32, %c0_i32_0 : i32, i32
  }
  func.func @transform_1(%arg0: i32) -> (i32, i32) {
    %c0_i32 = arith.constant 0 : i32
    %c0_i32_0 = arith.constant 0 : i32
    %c0_i32_1 = arith.constant 0 : i32
    return %c0_i32, %c0_i32_0 : i32, i32
  }
  func.func @transform_2(%arg0: i32) -> (i32, i32) {
    %c0_i32 = arith.constant 0 : i32
    %c0_i32_0 = arith.constant 0 : i32
    %c0_i32_1 = arith.constant 0 : i32
    return %c0_i32, %c0_i32_0 : i32, i32
  }
  func.func @transform_3(%arg0: i32) -> (i32, i32) {
    %c0_i32 = arith.constant 0 : i32
    %c0_i32_0 = arith.constant 0 : i32
    %c0_i32_1 = arith.constant 0 : i32
    return %c0_i32, %c0_i32_0 : i32, i32
  }
  func.func @transform_4(%arg0: i32) -> (i32, i32) {
    %c0_i32 = arith.constant 0 : i32
    %c0_i32_0 = arith.constant 0 : i32
    %c0_i32_1 = arith.constant 0 : i32
    return %c0_i32, %c0_i32_0 : i32, i32
  }
  func.func @transform_5(%arg0: i32) -> (i32, i32) {
    %c0_i32 = arith.constant 0 : i32
    %c0_i32_0 = arith.constant 0 : i32
    %c0_i32_1 = arith.constant 0 : i32
    return %c0_i32, %c0_i32_0 : i32, i32
  }
}

</mosaic_0001>

<llo_original>
// kernel: tpu_custom_call.1
$region0: #{tpu_custom_call.1}
  #allocation0 [shape = 'u32[]', space=smem, size = 0x4, offset = 0x4, fixed_abs, tag = 'smem constant byte address 0x4 - core index']
  #allocation1 [shape = 'u32[144,128]{1,0:T(1,128)}', space=vmem, size = 0x12000, scoped, tag = 'internal scratch']
  %s0 = inlined_call_operand.hbm [shape: f32[16,32], index: 0, kind: input, shape index: {}]
  %s1 = inlined_call_operand.hbm [shape: f32[32,96], index: 1, kind: input, shape index: {}]
  %s2 = inlined_call_operand.vmem [shape: f32[1,96], index: 2, kind: input, shape index: {}]
  %s3 = inlined_call_operand.hbm [shape: f32[32,32], index: 3, kind: input, shape index: {}]
  %s4 = inlined_call_operand.vmem [shape: f32[1,32], index: 4, kind: input, shape index: {}]
  %s5 = inlined_call_operand.hbm [shape: f32[16,32], index: 5, kind: output, shape index: {}]
  %s6 = sld [smem:[#allocation0]]
  $region42: #{tpu_custom_call.1} parent=0
    _
  %s8 = ssub.s32 1, %s6
  %s9 = scalar_select 0, %s8, %s6
  $region1: #{tpu_custom_call.1} parent=0
    #allocation2 [shape = 'u8[8192]{0}', space=vmem, size = 0x2000, scoped, tag = 'input window, operand 0, single buffered']
    #allocation3 [shape = 's32[1]{0}', space=sflag, size = 0x4, scoped, tag = 'scoped memory for tpu_custom_call.1']
    #allocation4 [shape = 's32[1]{0}', space=sflag, size = 0x4, scoped, tag = 'scoped memory for tpu_custom_call.1']
    #allocation5 [shape = 'u8[16384]{0}', space=vmem, size = 0x4000, scoped, tag = 'input window, operand 1, single buffered']
    #allocation6 [shape = 's32[1]{0}', space=sflag, size = 0x4, scoped, tag = 'scoped memory for tpu_custom_call.1']
    #allocation7 [shape = 'u8[16384]{0}', space=vmem, size = 0x4000, scoped, tag = 'input window, operand 3, single buffered']
    #allocation8 [shape = 'u8[8192]{0}', space=vmem, size = 0x2000, scoped, tag = 'output window, operand 0, single buffered']
    %10 = vsyncpa [#allocation3], 0
    %11 = vsyncpa [#allocation6], 0
    %12 = vsyncpa [#allocation4], 0
    // Predicated region
    $region2: #{tpu_custom_call.1} parent=1 // pred_check
      _
    $region3: #{tpu_custom_call.1} parent=1 // pred_check_branch
      %14 = sbr.rel (0) target = $region5
    $region4: #{tpu_custom_call.1} parent=1 // pred_region
      %s16 = ssub.s32 256, 256
      %17 = vsyncadd [#allocation3], %s16
      %s18 = sshll.u32 [#allocation2], 4
      %s19 = int_to_ptr.vmem [resolvable:$true] %s18
      %24 = dma.hbm_to_vmem [thread:$0]  %s0, 256, %s19, [#allocation3], 128, 128, 8
    $region5: #{tpu_custom_call.1} parent=1 // pred_fallthru
      _
    // Predicated region
    $region6: #{tpu_custom_call.1} parent=1 // pred_check
      _
    $region7: #{tpu_custom_call.1} parent=1 // pred_check_branch
      %26 = sbr.rel (0) target = $region9
    $region8: #{tpu_custom_call.1} parent=1 // pred_region
      %s28 = ssub.s32 512, 512
      %29 = vsyncadd [#allocation6], %s28
      %s30 = sshll.u32 [#allocation5], 4
      %s31 = int_to_ptr.vmem [resolvable:$true] %s30
      %36 = dma.hbm_to_vmem [thread:$0]  %s1, 512, %s31, [#allocation6], 128, 128, 8
    $region9: #{tpu_custom_call.1} parent=1 // pred_fallthru
      _
    // Predicated region
    $region10: #{tpu_custom_call.1} parent=1 // pred_check
      _
    $region11: #{tpu_custom_call.1} parent=1 // pred_check_branch
      %38 = sbr.rel (0) target = $region13
    $region12: #{tpu_custom_call.1} parent=1 // pred_region
      _
    $region13: #{tpu_custom_call.1} parent=1 // pred_fallthru
      _
    // Predicated region
    $region14: #{tpu_custom_call.1} parent=1 // pred_check
      _
    $region15: #{tpu_custom_call.1} parent=1 // pred_check_branch
      %40 = sbr.rel (0) target = $region17
    $region16: #{tpu_custom_call.1} parent=1 // pred_region
      %s42 = ssub.s32 512, 512
      %43 = vsyncadd [#allocation6], %s42
      %s44 = sshll.u32 [#allocation7], 4
      %s45 = int_to_ptr.vmem [resolvable:$true] %s44
      %50 = dma.hbm_to_vmem [thread:$0]  %s3, 512, %s45, [#allocation6], 128, 128, 8
    $region17: #{tpu_custom_call.1} parent=1 // pred_fallthru
      _
    // Predicated region
    $region18: #{tpu_custom_call.1} parent=1 // pred_check
      _
    $region19: #{tpu_custom_call.1} parent=1 // pred_check_branch
      %52 = sbr.rel (0) target = $region21
    $region20: #{tpu_custom_call.1} parent=1 // pred_region
      _
    $region21: #{tpu_custom_call.1} parent=1 // pred_fallthru
      _
    // Predicated region
    $region22: #{tpu_custom_call.1} parent=1 // pred_check
      _
    $region23: #{tpu_custom_call.1} parent=1 // pred_check_branch
      %54 = sbr.rel (0) target = $region25
    $region24: #{tpu_custom_call.1} parent=1 // pred_region
      %55 = dma.done [#allocation3], 256
    $region25: #{tpu_custom_call.1} parent=1 // pred_fallthru
      _
    // Predicated region
    $region26: #{tpu_custom_call.1} parent=1 // pred_check
      _
    $region27: #{tpu_custom_call.1} parent=1 // pred_check_branch
      %57 = sbr.rel (0) target = $region29
    $region28: #{tpu_custom_call.1} parent=1 // pred_region
      %58 = dma.done [#allocation6], 512
    $region29: #{tpu_custom_call.1} parent=1 // pred_fallthru
      _
    // Predicated region
    $region30: #{tpu_custom_call.1} parent=1 // pred_check
      _
    $region31: #{tpu_custom_call.1} parent=1 // pred_check_branch
      %60 = sbr.rel (0) target = $region33
    $region32: #{tpu_custom_call.1} parent=1 // pred_region
      %61 = dma.done [#allocation6], 512
    $region33: #{tpu_custom_call.1} parent=1 // pred_fallthru
      _
    %v62 = vld [vmem:[#allocation2] sm:$0xff]
    %v63 = vld [vmem:[#allocation2 + $0x8] sm:$0xff]
    %v64 = vld [vmem:[#allocation5] sm:$0xff]
    %v65 = vld [vmem:[#allocation5 + $0x8] sm:$0xff]
    %v66 = vld [vmem:[#allocation5 + $0x10] sm:$0xff]
    %v67 = vld [vmem:[#allocation5 + $0x18] sm:$0xff]
    %v68 = vld [vmem:[%s2] sm:$0x1]
    %v70 = vlaneseq
    %v71 = vshrl.u32 %v70, 7
    %v72 = vsub.s32 0, %v71
    %v73 = vrot.slane %v68, %v72
    %vm75 = vcmask 261120
    %v77 = vsel %vm75, %v62, 0
    %v80 = vsel %vm75, %v63, 0
    %82 = vmatprep.subr.mxu0 0.0
    %83 = vmatpush1.msra.mxu0 %v64
    %84 = vmatprep.subr.mxu0 0.0
    %85 = vmatpush1.msra.mxu0 %v65
    %86 = vmatprep.subr.mxu0 0.0
    %87 = vmatpush1.msra.mxu0 %v66
    %88 = vmatprep.subr.mxu0 0.0
    %89 = vmatpush1.msra.mxu0 %v67
    %90 = vmatprep.subr.mxu0 0.0
    %91 = vmatpush1.msra.mxu0 0.0
    %92 = vmatprep.subr.mxu0 0.0
    %93 = vmatpush1.msra.mxu0 0.0
    %94 = vmatprep.subr.mxu0 0.0
    %95 = vmatpush1.msra.mxu0 0.0
    %96 = vmatprep.subr.mxu0 0.0
    %97 = vmatpush1.msra.mxu0 0.0
    %98 = vmatprep.subr.mxu0 0.0
    %99 = vmatpush1.msra.mxu0 0.0
    %100 = vmatprep.subr.mxu0 0.0
    %101 = vmatpush1.msra.mxu0 0.0
    %102 = vmatprep.subr.mxu0 0.0
    %103 = vmatpush1.msra.mxu0 0.0
    %104 = vmatprep.subr.mxu0 0.0
    %105 = vmatpush1.msra.mxu0 0.0
    %106 = vmatprep.subr.mxu0 0.0
    %107 = vmatpush1.msra.mxu0 0.0
    %108 = vmatprep.subr.mxu0 0.0
    %109 = vmatpush1.msra.mxu0 0.0
    %110 = vmatprep.subr.mxu0 0.0
    %111 = vmatpush1.msra.mxu0 0.0
    %112 = vmatprep.subr.mxu0 0.0
    %113 = vmatpush1.msra.mxu0 0.0
    %114 = vmatprep.subr.mxu0 0.0
    %115 = vmatpush1.msra.mxu0 0.0
    %116 = vmatprep.subr.mxu0 0.0
    %117 = vmatpush1.msra.mxu0 0.0
    %118 = vmatprep.subr.mxu0 0.0
    %119 = vmatpush1.msra.mxu0 0.0
    %120 = vmatprep.subr.mxu0 0.0
    %121 = vmatpush1.msra.mxu0 0.0
    %122 = vmatprep.subr.mxu0 0.0
    %123 = vmatpush1.msra.mxu0 0.0
    %124 = vmatprep.subr.mxu0 0.0
    %125 = vmatpush1.msra.mxu0 0.0
    %126 = vmatprep.subr.mxu0 0.0
    %127 = vmatpush1.msra.mxu0 0.0
    %128 = vmatprep.subr.mxu0 0.0
    %129 = vmatpush1.msra.mxu0 0.0
    %130 = vmatprep.subr.mxu0 0.0
    %131 = vmatpush1.msra.mxu0 0.0
    %132 = vmatprep.subr.mxu0 0.0
    %133 = vmatpush1.msra.mxu0 0.0
    %134 = vmatprep.subr.mxu0 0.0
    %135 = vmatpush1.msra.mxu0 0.0
    %136 = vmatprep.subr.mxu0 0.0
    %137 = vmatpush1.msra.mxu0 0.0
    %138 = vmatprep.subr.mxu0 0.0
    %139 = vmatpush1.msra.mxu0 0.0
    %140 = vmatprep.subr.mxu0 0.0
    %141 = vmatpush1.msra.mxu0 0.0
    %142 = vmatprep.subr.mxu0 0.0
    %143 = vmatpush1.msra.mxu0 0.0
    %144 = vmatprep.subr.mxu0 0.0
    %145 = vmatpush1.msra.mxu0 0.0
    %146 = vmatprep.mubr.f32.mxu0 0.0
    %147 = vmatmul.mubr.f32.gmra.mrb[0].mxu0 %v77
    %v148 = vpop.f32.mrb[0].mxu0
    %v149 = vadd.f32 %v73, %v148
    %v150 = vpop.f32.mrb[0].mxu0
    %151 = vmatprep.mubr.f32.mxu0 0.0
    %152 = vmatmul.mubr.f32.gmra.mrb[0].mxu0 %v80
    %v153 = vpop.f32.mrb[0].mxu0
    %v154 = vadd.f32 %v73, %v153
    %v155 = vpop.f32.mrb[0].mxu0
    %156 = vdwg.mxu0
    %159 = vrot.lane.b32.xlu0 %v149, 120
    %v160 = vpop.permute.xlu0 %159
    %161 = vrot.lane.b32.xlu0 %v154, 120
    %v162 = vpop.permute.xlu0 %161
    %165 = vrot.lane.b32.xlu0 %v149, 112
    %v166 = vpop.permute.xlu0 %165
    %167 = vrot.lane.b32.xlu0 %v154, 112
    %v168 = vpop.permute.xlu0 %167
    %171 = vrot.lane.b32.xlu0 %v149, 104
    %v172 = vpop.permute.xlu0 %171
    %173 = vrot.lane.b32.xlu0 %v154, 104
    %v174 = vpop.permute.xlu0 %173
    %177 = vrot.lane.b32.xlu0 %v149, 96
    %v178 = vpop.permute.xlu0 %177
    %179 = vrot.lane.b32.xlu0 %v154, 96
    %v180 = vpop.permute.xlu0 %179
    %183 = vrot.lane.b32.xlu0 %v149, 88
    %v184 = vpop.permute.xlu0 %183
    %185 = vrot.lane.b32.xlu0 %v154, 88
    %v186 = vpop.permute.xlu0 %185
    %189 = vrot.lane.b32.xlu0 %v149, 80
    %v190 = vpop.permute.xlu0 %189
    %191 = vrot.lane.b32.xlu0 %v154, 80
    %v192 = vpop.permute.xlu0 %191
    %195 = vrot.lane.b32.xlu0 %v149, 72
    %v196 = vpop.permute.xlu0 %195
    %197 = vrot.lane.b32.xlu0 %v154, 72
    %v198 = vpop.permute.xlu0 %197
    %201 = vrot.lane.b32.xlu0 %v149, 64
    %v202 = vpop.permute.xlu0 %201
    %203 = vrot.lane.b32.xlu0 %v154, 64
    %v204 = vpop.permute.xlu0 %203
    %207 = vrot.lane.b32.xlu0 %v149, 56
    %v208 = vpop.permute.xlu0 %207
    %209 = vrot.lane.b32.xlu0 %v154, 56
    %v210 = vpop.permute.xlu0 %209
    %213 = vrot.lane.b32.xlu0 %v149, 48
    %v214 = vpop.permute.xlu0 %213
    %215 = vrot.lane.b32.xlu0 %v154, 48
    %v216 = vpop.permute.xlu0 %215
    %219 = vrot.lane.b32.xlu0 %v149, 40
    %v220 = vpop.permute.xlu0 %219
    %221 = vrot.lane.b32.xlu0 %v154, 40
    %v222 = vpop.permute.xlu0 %221
    %v225 = vcombine.low %v149, %v166
    %v226 = vcombine.high %v149, %v166
    %v228 = vunpack.c.l.s4 1983009808
    %v229 = vunpack.c.0.s8 %v228
    %v230 = vlaneseq
    %v231 = vshrl.u32 %v230, 7
    %v232 = vsub.s32 %v229, %v231
    %v233 = vrot.slane %v225, %v232
    %v235 = vunpack.c.l.s4 1983009808
    %v236 = vunpack.c.0.s8 %v235
    %v237 = vlaneseq
    %v238 = vshrl.u32 %v237, 7
    %v239 = vsub.s32 %v236, %v238
    %v240 = vrot.slane %v226, %v239
    %v241 = vcombine.low %v160, %v172
    %v242 = vcombine.high %v160, %v172
    %v244 = vunpack.c.l.s4 1983009808
    %v245 = vunpack.c.0.s8 %v244
    %v246 = vlaneseq
    %v247 = vshrl.u32 %v246, 7
    %v248 = vsub.s32 %v245, %v247
    %v249 = vrot.slane %v241, %v248
    %v251 = vunpack.c.l.s4 1983009808
    %v252 = vunpack.c.0.s8 %v251
    %v253 = vlaneseq
    %v254 = vshrl.u32 %v253, 7
    %v255 = vsub.s32 %v252, %v254
    %v256 = vrot.slane %v242, %v255
    %v257 = vcombine.low %v178, %v190
    %v258 = vcombine.high %v178, %v190
    %v260 = vunpack.c.l.s4 1983009808
    %v261 = vunpack.c.0.s8 %v260
    %v262 = vlaneseq
    %v263 = vshrl.u32 %v262, 7
    %v264 = vsub.s32 %v261, %v263
    %v265 = vrot.slane %v257, %v264
    %v267 = vunpack.c.l.s4 1983009808
    %v268 = vunpack.c.0.s8 %v267
    %v269 = vlaneseq
    %v270 = vshrl.u32 %v269, 7
    %v271 = vsub.s32 %v268, %v270
    %v272 = vrot.slane %v258, %v271
    %v273 = vcombine.low %v184, %v196
    %v274 = vcombine.high %v184, %v196
    %v276 = vunpack.c.l.s4 1983009808
    %v277 = vunpack.c.0.s8 %v276
    %v278 = vlaneseq
    %v279 = vshrl.u32 %v278, 7
    %v280 = vsub.s32 %v277, %v279
    %v281 = vrot.slane %v273, %v280
    %v283 = vunpack.c.l.s4 1983009808
    %v284 = vunpack.c.0.s8 %v283
    %v285 = vlaneseq
    %v286 = vshrl.u32 %v285, 7
    %v287 = vsub.s32 %v284, %v286
    %v288 = vrot.slane %v274, %v287
    %v289 = vcombine.low %v233, %v249
    %v290 = vcombine.high %v233, %v249
    %v292 = vunpack.c.l.s4 1934713408
    %v293 = vunpack.c.0.s8 %v292
    %v294 = vlaneseq
    %v295 = vshrl.u32 %v294, 7
    %v296 = vsub.s32 %v293, %v295
    %v297 = vrot.slane %v289, %v296
    %v299 = vunpack.c.l.s4 1934713408
    %v300 = vunpack.c.0.s8 %v299
    %v301 = vlaneseq
    %v302 = vshrl.u32 %v301, 7
    %v303 = vsub.s32 %v300, %v302
    %v304 = vrot.slane %v290, %v303
    %v305 = vcombine.low %v240, %v256
    %v306 = vcombine.high %v240, %v256
    %v308 = vunpack.c.l.s4 1934713408
    %v309 = vunpack.c.0.s8 %v308
    %v310 = vlaneseq
    %v311 = vshrl.u32 %v310, 7
    %v312 = vsub.s32 %v309, %v311
    %v313 = vrot.slane %v305, %v312
    %v315 = vunpack.c.l.s4 1934713408
    %v316 = vunpack.c.0.s8 %v315
    %v317 = vlaneseq
    %v318 = vshrl.u32 %v317, 7
    %v319 = vsub.s32 %v316, %v318
    %v320 = vrot.slane %v306, %v319
    %v321 = vcombine.low %v265, %v281
    %v322 = vcombine.high %v265, %v281
    %v324 = vunpack.c.l.s4 1934713408
    %v325 = vunpack.c.0.s8 %v324
    %v326 = vlaneseq
    %v327 = vshrl.u32 %v326, 7
    %v328 = vsub.s32 %v325, %v327
    %v329 = vrot.slane %v321, %v328
    %v331 = vunpack.c.l.s4 1934713408
    %v332 = vunpack.c.0.s8 %v331
    %v333 = vlaneseq
    %v334 = vshrl.u32 %v333, 7
    %v335 = vsub.s32 %v332, %v334
    %v336 = vrot.slane %v322, %v335
    %v337 = vcombine.low %v272, %v288
    %v338 = vcombine.high %v272, %v288
    %v340 = vunpack.c.l.s4 1934713408
    %v341 = vunpack.c.0.s8 %v340
    %v342 = vlaneseq
    %v343 = vshrl.u32 %v342, 7
    %v344 = vsub.s32 %v341, %v343
    %v345 = vrot.slane %v337, %v344
    %v347 = vunpack.c.l.s4 1934713408
    %v348 = vunpack.c.0.s8 %v347
    %v349 = vlaneseq
    %v350 = vshrl.u32 %v349, 7
    %v351 = vsub.s32 %v348, %v350
    %v352 = vrot.slane %v338, %v351
    %v353 = vcombine.low %v297, %v329
    %v354 = vcombine.high %v297, %v329
    %v355 = vcombine.low %v304, %v336
    %v356 = vcombine.high %v304, %v336
    %v357 = vcombine.low %v313, %v345
    %v358 = vcombine.high %v313, %v345
    %v359 = vcombine.low %v320, %v352
    %v360 = vcombine.high %v320, %v352
    %v361 = vcombine.low %v202, %v214
    %v362 = vcombine.high %v202, %v214
    %v364 = vunpack.c.l.s4 1983009808
    %v365 = vunpack.c.0.s8 %v364
    %v366 = vlaneseq
    %v367 = vshrl.u32 %v366, 7
    %v368 = vsub.s32 %v365, %v367
    %v369 = vrot.slane %v361, %v368
    %v371 = vunpack.c.l.s4 1983009808
    %v372 = vunpack.c.0.s8 %v371
    %v373 = vlaneseq
    %v374 = vshrl.u32 %v373, 7
    %v375 = vsub.s32 %v372, %v374
    %v376 = vrot.slane %v362, %v375
    %v377 = vcombine.low %v208, %v220
    %v378 = vcombine.high %v208, %v220
    %v380 = vunpack.c.l.s4 1983009808
    %v381 = vunpack.c.0.s8 %v380
    %v382 = vlaneseq
    %v383 = vshrl.u32 %v382, 7
    %v384 = vsub.s32 %v381, %v383
    %v385 = vrot.slane %v377, %v384
    %v387 = vunpack.c.l.s4 1983009808
    %v388 = vunpack.c.0.s8 %v387
    %v389 = vlaneseq
    %v390 = vshrl.u32 %v389, 7
    %v391 = vsub.s32 %v388, %v390
    %v392 = vrot.slane %v378, %v391
    %v393 = vcombine.low %v369, %v385
    %v394 = vcombine.high %v369, %v385
    %v396 = vunpack.c.l.s4 1934713408
    %v397 = vunpack.c.0.s8 %v396
    %v398 = vlaneseq
    %v399 = vshrl.u32 %v398, 7
    %v400 = vsub.s32 %v397, %v399
    %v401 = vrot.slane %v393, %v400
    %v403 = vunpack.c.l.s4 1934713408
    %v404 = vunpack.c.0.s8 %v403
    %v405 = vlaneseq
    %v406 = vshrl.u32 %v405, 7
    %v407 = vsub.s32 %v404, %v406
    %v408 = vrot.slane %v394, %v407
    %v409 = vcombine.low %v376, %v392
    %v410 = vcombine.high %v376, %v392
    %v412 = vunpack.c.l.s4 1934713408
    %v413 = vunpack.c.0.s8 %v412
    %v414 = vlaneseq
    %v415 = vshrl.u32 %v414, 7
    %v416 = vsub.s32 %v413, %v415
    %v417 = vrot.slane %v409, %v416
    %v419 = vunpack.c.l.s4 1934713408
    %v420 = vunpack.c.0.s8 %v419
    %v421 = vlaneseq
    %v422 = vshrl.u32 %v421, 7
    %v423 = vsub.s32 %v420, %v422
    %v424 = vrot.slane %v410, %v423
    %v425 = vcombine.high %v401, 0.0
    %v426 = vcombine.high %v408, 0.0
    %v427 = vcombine.high %v417, 0.0
    %v428 = vcombine.high %v424, 0.0
    %v429 = vcombine.low %v154, %v168
    %v430 = vcombine.high %v154, %v168
    %v432 = vunpack.c.l.s4 1983009808
    %v433 = vunpack.c.0.s8 %v432
    %v434 = vlaneseq
    %v435 = vshrl.u32 %v434, 7
    %v436 = vsub.s32 %v433, %v435
    %v437 = vrot.slane %v429, %v436
    %v439 = vunpack.c.l.s4 1983009808
    %v440 = vunpack.c.0.s8 %v439
    %v441 = vlaneseq
    %v442 = vshrl.u32 %v441, 7
    %v443 = vsub.s32 %v440, %v442
    %v444 = vrot.slane %v430, %v443
    %v445 = vcombine.low %v162, %v174
    %v446 = vcombine.high %v162, %v174
    %v448 = vunpack.c.l.s4 1983009808
    %v449 = vunpack.c.0.s8 %v448
    %v450 = vlaneseq
    %v451 = vshrl.u32 %v450, 7
    %v452 = vsub.s32 %v449, %v451
    %v453 = vrot.slane %v445, %v452
    %v455 = vunpack.c.l.s4 1983009808
    %v456 = vunpack.c.0.s8 %v455
    %v457 = vlaneseq
    %v458 = vshrl.u32 %v457, 7
    %v459 = vsub.s32 %v456, %v458
    %v460 = vrot.slane %v446, %v459
    %v461 = vcombine.low %v180, %v192
    %v462 = vcombine.high %v180, %v192
    %v464 = vunpack.c.l.s4 1983009808
    %v465 = vunpack.c.0.s8 %v464
    %v466 = vlaneseq
    %v467 = vshrl.u32 %v466, 7
    %v468 = vsub.s32 %v465, %v467
    %v469 = vrot.slane %v461, %v468
    %v471 = vunpack.c.l.s4 1983009808
    %v472 = vunpack.c.0.s8 %v471
    %v473 = vlaneseq
    %v474 = vshrl.u32 %v473, 7
    %v475 = vsub.s32 %v472, %v474
    %v476 = vrot.slane %v462, %v475
    %v477 = vcombine.low %v186, %v198
    %v478 = vcombine.high %v186, %v198
    %v480 = vunpack.c.l.s4 1983009808
    %v481 = vunpack.c.0.s8 %v480
    %v482 = vlaneseq
    %v483 = vshrl.u32 %v482, 7
    %v484 = vsub.s32 %v481, %v483
    %v485 = vrot.slane %v477, %v484
    %v487 = vunpack.c.l.s4 1983009808
    %v488 = vunpack.c.0.s8 %v487
    %v489 = vlaneseq
    %v490 = vshrl.u32 %v489, 7
    %v491 = vsub.s32 %v488, %v490
    %v492 = vrot.slane %v478, %v491
    %v493 = vcombine.low %v437, %v453
    %v494 = vcombine.high %v437, %v453
    %v496 = vunpack.c.l.s4 1934713408
    %v497 = vunpack.c.0.s8 %v496
    %v498 = vlaneseq
    %v499 = vshrl.u32 %v498, 7
    %v500 = vsub.s32 %v497, %v499
    %v501 = vrot.slane %v493, %v500
    %v503 = vunpack.c.l.s4 1934713408
    %v504 = vunpack.c.0.s8 %v503
    %v505 = vlaneseq
    %v506 = vshrl.u32 %v505, 7
    %v507 = vsub.s32 %v504, %v506
    %v508 = vrot.slane %v494, %v507
    %v509 = vcombine.low %v444, %v460
    %v510 = vcombine.high %v444, %v460
    %v512 = vunpack.c.l.s4 1934713408
    %v513 = vunpack.c.0.s8 %v512
    %v514 = vlaneseq
    %v515 = vshrl.u32 %v514, 7
    %v516 = vsub.s32 %v513, %v515
    %v517 = vrot.slane %v509, %v516
    %v519 = vunpack.c.l.s4 1934713408
    %v520 = vunpack.c.0.s8 %v519
    %v521 = vlaneseq
    %v522 = vshrl.u32 %v521, 7
    %v523 = vsub.s32 %v520, %v522
    %v524 = vrot.slane %v510, %v523
    %v525 = vcombine.low %v469, %v485
    %v526 = vcombine.high %v469, %v485
    %v528 = vunpack.c.l.s4 1934713408
    %v529 = vunpack.c.0.s8 %v528
    %v530 = vlaneseq
    %v531 = vshrl.u32 %v530, 7
    %v532 = vsub.s32 %v529, %v531
    %v533 = vrot.slane %v525, %v532
    %v535 = vunpack.c.l.s4 1934713408
    %v536 = vunpack.c.0.s8 %v535
    %v537 = vlaneseq
    %v538 = vshrl.u32 %v537, 7
    %v539 = vsub.s32 %v536, %v538
    %v540 = vrot.slane %v526, %v539
    %v541 = vcombine.low %v476, %v492
    %v542 = vcombine.high %v476, %v492
    %v544 = vunpack.c.l.s4 1934713408
    %v545 = vunpack.c.0.s8 %v544
    %v546 = vlaneseq
    %v547 = vshrl.u32 %v546, 7
    %v548 = vsub.s32 %v545, %v547
    %v549 = vrot.slane %v541, %v548
    %v551 = vunpack.c.l.s4 1934713408
    %v552 = vunpack.c.0.s8 %v551
    %v553 = vlaneseq
    %v554 = vshrl.u32 %v553, 7
    %v555 = vsub.s32 %v552, %v554
    %v556 = vrot.slane %v542, %v555
    %v557 = vcombine.low %v501, %v533
    %v558 = vcombine.high %v501, %v533
    %v559 = vcombine.low %v508, %v540
    %v560 = vcombine.high %v508, %v540
    %v561 = vcombine.low %v517, %v549
    %v562 = vcombine.high %v517, %v549
    %v563 = vcombine.low %v524, %v556
    %v564 = vcombine.high %v524, %v556
    %v565 = vcombine.low %v204, %v216
    %v566 = vcombine.high %v204, %v216
    %v568 = vunpack.c.l.s4 1983009808
    %v569 = vunpack.c.0.s8 %v568
    %v570 = vlaneseq
    %v571 = vshrl.u32 %v570, 7
    %v572 = vsub.s32 %v569, %v571
    %v573 = vrot.slane %v565, %v572
    %v575 = vunpack.c.l.s4 1983009808
    %v576 = vunpack.c.0.s8 %v575
    %v577 = vlaneseq
    %v578 = vshrl.u32 %v577, 7
    %v579 = vsub.s32 %v576, %v578
    %v580 = vrot.slane %v566, %v579
    %v581 = vcombine.low %v210, %v222
    %v582 = vcombine.high %v210, %v222
    %v584 = vunpack.c.l.s4 1983009808
    %v585 = vunpack.c.0.s8 %v584
    %v586 = vlaneseq
    %v587 = vshrl.u32 %v586, 7
    %v588 = vsub.s32 %v585, %v587
    %v589 = vrot.slane %v581, %v588
    %v591 = vunpack.c.l.s4 1983009808
    %v592 = vunpack.c.0.s8 %v591
    %v593 = vlaneseq
    %v594 = vshrl.u32 %v593, 7
    %v595 = vsub.s32 %v592, %v594
    %v596 = vrot.slane %v582, %v595
    %v597 = vcombine.low %v573, %v589
    %v598 = vcombine.high %v573, %v589
    %v600 = vunpack.c.l.s4 1934713408
    %v601 = vunpack.c.0.s8 %v600
    %v602 = vlaneseq
    %v603 = vshrl.u32 %v602, 7
    %v604 = vsub.s32 %v601, %v603
    %v605 = vrot.slane %v597, %v604
    %v607 = vunpack.c.l.s4 1934713408
    %v608 = vunpack.c.0.s8 %v607
    %v609 = vlaneseq
    %v610 = vshrl.u32 %v609, 7
    %v611 = vsub.s32 %v608, %v610
    %v612 = vrot.slane %v598, %v611
    %v613 = vcombine.low %v580, %v596
    %v614 = vcombine.high %v580, %v596
    %v616 = vunpack.c.l.s4 1934713408
    %v617 = vunpack.c.0.s8 %v616
    %v618 = vlaneseq
    %v619 = vshrl.u32 %v618, 7
    %v620 = vsub.s32 %v617, %v619
    %v621 = vrot.slane %v613, %v620
    %v623 = vunpack.c.l.s4 1934713408
    %v624 = vunpack.c.0.s8 %v623
    %v625 = vlaneseq
    %v626 = vshrl.u32 %v625, 7
    %v627 = vsub.s32 %v624, %v626
    %v628 = vrot.slane %v614, %v627
    %v629 = vcombine.high %v605, 0.0
    %v630 = vcombine.high %v612, 0.0
    %v631 = vcombine.high %v621, 0.0
    %v632 = vcombine.high %v628, 0.0
    %v633 = vcombine.low %v353, %v355
    %v634 = vcombine.high %v353, %v355
    %v636 = vunpack.c.l.s4 1983009808
    %v637 = vunpack.c.0.s8 %v636
    %v638 = vlaneseq
    %v639 = vshrl.u32 %v638, 7
    %v640 = vsub.s32 %v637, %v639
    %v641 = vrot.slane %v633, %v640
    %v643 = vunpack.c.l.s4 1983009808
    %v644 = vunpack.c.0.s8 %v643
    %v645 = vlaneseq
    %v646 = vshrl.u32 %v645, 7
    %v647 = vsub.s32 %v644, %v646
    %v648 = vrot.slane %v634, %v647
    %v649 = vcombine.low %v354, %v356
    %v650 = vcombine.high %v354, %v356
    %v652 = vunpack.c.l.s4 1983009808
    %v653 = vunpack.c.0.s8 %v652
    %v654 = vlaneseq
    %v655 = vshrl.u32 %v654, 7
    %v656 = vsub.s32 %v653, %v655
    %v657 = vrot.slane %v649, %v656
    %v659 = vunpack.c.l.s4 1983009808
    %v660 = vunpack.c.0.s8 %v659
    %v661 = vlaneseq
    %v662 = vshrl.u32 %v661, 7
    %v663 = vsub.s32 %v660, %v662
    %v664 = vrot.slane %v650, %v663
    %v665 = vcombine.low %v357, %v359
    %v666 = vcombine.high %v357, %v359
    %v668 = vunpack.c.l.s4 1983009808
    %v669 = vunpack.c.0.s8 %v668
    %v670 = vlaneseq
    %v671 = vshrl.u32 %v670, 7
    %v672 = vsub.s32 %v669, %v671
    %v673 = vrot.slane %v665, %v672
    %v675 = vunpack.c.l.s4 1983009808
    %v676 = vunpack.c.0.s8 %v675
    %v677 = vlaneseq
    %v678 = vshrl.u32 %v677, 7
    %v679 = vsub.s32 %v676, %v678
    %v680 = vrot.slane %v666, %v679
    %v681 = vcombine.low %v358, %v360
    %v682 = vcombine.high %v358, %v360
    %v684 = vunpack.c.l.s4 1983009808
    %v685 = vunpack.c.0.s8 %v684
    %v686 = vlaneseq
    %v687 = vshrl.u32 %v686, 7
    %v688 = vsub.s32 %v685, %v687
    %v689 = vrot.slane %v681, %v688
    %v691 = vunpack.c.l.s4 1983009808
    %v692 = vunpack.c.0.s8 %v691
    %v693 = vlaneseq
    %v694 = vshrl.u32 %v693, 7
    %v695 = vsub.s32 %v692, %v694
    %v696 = vrot.slane %v682, %v695
    %v697 = vcombine.low %v641, %v657
    %v698 = vcombine.high %v641, %v657
    %v700 = vunpack.c.l.s4 1934713408
    %v701 = vunpack.c.0.s8 %v700
    %v702 = vlaneseq
    %v703 = vshrl.u32 %v702, 7
    %v704 = vsub.s32 %v701, %v703
    %v705 = vrot.slane %v697, %v704
    %v707 = vunpack.c.l.s4 1934713408
    %v708 = vunpack.c.0.s8 %v707
    %v709 = vlaneseq
    %v710 = vshrl.u32 %v709, 7
    %v711 = vsub.s32 %v708, %v710
    %v712 = vrot.slane %v698, %v711
    %v713 = vcombine.low %v648, %v664
    %v714 = vcombine.high %v648, %v664
    %v716 = vunpack.c.l.s4 1934713408
    %v717 = vunpack.c.0.s8 %v716
    %v718 = vlaneseq
    %v719 = vshrl.u32 %v718, 7
    %v720 = vsub.s32 %v717, %v719
    %v721 = vrot.slane %v713, %v720
    %v723 = vunpack.c.l.s4 1934713408
    %v724 = vunpack.c.0.s8 %v723
    %v725 = vlaneseq
    %v726 = vshrl.u32 %v725, 7
    %v727 = vsub.s32 %v724, %v726
    %v728 = vrot.slane %v714, %v727
    %v729 = vcombine.low %v673, %v689
    %v730 = vcombine.high %v673, %v689
    %v732 = vunpack.c.l.s4 1934713408
    %v733 = vunpack.c.0.s8 %v732
    %v734 = vlaneseq
    %v735 = vshrl.u32 %v734, 7
    %v736 = vsub.s32 %v733, %v735
    %v737 = vrot.slane %v729, %v736
    %v739 = vunpack.c.l.s4 1934713408
    %v740 = vunpack.c.0.s8 %v739
    %v741 = vlaneseq
    %v742 = vshrl.u32 %v741, 7
    %v743 = vsub.s32 %v740, %v742
    %v744 = vrot.slane %v730, %v743
    %v745 = vcombine.low %v680, %v696
    %v746 = vcombine.high %v680, %v696
    %v748 = vunpack.c.l.s4 1934713408
    %v749 = vunpack.c.0.s8 %v748
    %v750 = vlaneseq
    %v751 = vshrl.u32 %v750, 7
    %v752 = vsub.s32 %v749, %v751
    %v753 = vrot.slane %v745, %v752
    %v755 = vunpack.c.l.s4 1934713408
    %v756 = vunpack.c.0.s8 %v755
    %v757 = vlaneseq
    %v758 = vshrl.u32 %v757, 7
    %v759 = vsub.s32 %v756, %v758
    %v760 = vrot.slane %v746, %v759
    %v761 = vcombine.low %v705, %v737
    %v762 = vcombine.high %v705, %v737
    %v763 = vcombine.low %v712, %v744
    %v764 = vcombine.high %v712, %v744
    %v765 = vcombine.low %v721, %v753
    %v766 = vcombine.high %v721, %v753
    %v767 = vcombine.low %v728, %v760
    %v768 = vcombine.high %v728, %v760
    %v769 = vcombine.low %v557, %v559
    %v770 = vcombine.high %v557, %v559
    %v772 = vunpack.c.l.s4 1983009808
    %v773 = vunpack.c.0.s8 %v772
    %v774 = vlaneseq
    %v775 = vshrl.u32 %v774, 7
    %v776 = vsub.s32 %v773, %v775
    %v777 = vrot.slane %v769, %v776
    %v779 = vunpack.c.l.s4 1983009808
    %v780 = vunpack.c.0.s8 %v779
    %v781 = vlaneseq
    %v782 = vshrl.u32 %v781, 7
    %v783 = vsub.s32 %v780, %v782
    %v784 = vrot.slane %v770, %v783
    %v785 = vcombine.low %v558, %v560
    %v786 = vcombine.high %v558, %v560
    %v788 = vunpack.c.l.s4 1983009808
    %v789 = vunpack.c.0.s8 %v788
    %v790 = vlaneseq
    %v791 = vshrl.u32 %v790, 7
    %v792 = vsub.s32 %v789, %v791
    %v793 = vrot.slane %v785, %v792
    %v795 = vunpack.c.l.s4 1983009808
    %v796 = vunpack.c.0.s8 %v795
    %v797 = vlaneseq
    %v798 = vshrl.u32 %v797, 7
    %v799 = vsub.s32 %v796, %v798
    %v800 = vrot.slane %v786, %v799
    %v801 = vcombine.low %v561, %v563
    %v802 = vcombine.high %v561, %v563
    %v804 = vunpack.c.l.s4 1983009808
    %v805 = vunpack.c.0.s8 %v804
    %v806 = vlaneseq
    %v807 = vshrl.u32 %v806, 7
    %v808 = vsub.s32 %v805, %v807
    %v809 = vrot.slane %v801, %v808
    %v811 = vunpack.c.l.s4 1983009808
    %v812 = vunpack.c.0.s8 %v811
    %v813 = vlaneseq
    %v814 = vshrl.u32 %v813, 7
    %v815 = vsub.s32 %v812, %v814
    %v816 = vrot.slane %v802, %v815
    %v817 = vcombine.low %v562, %v564
    %v818 = vcombine.high %v562, %v564
    %v820 = vunpack.c.l.s4 1983009808
    %v821 = vunpack.c.0.s8 %v820
    %v822 = vlaneseq
    %v823 = vshrl.u32 %v822, 7
    %v824 = vsub.s32 %v821, %v823
    %v825 = vrot.slane %v817, %v824
    %v827 = vunpack.c.l.s4 1983009808
    %v828 = vunpack.c.0.s8 %v827
    %v829 = vlaneseq
    %v830 = vshrl.u32 %v829, 7
    %v831 = vsub.s32 %v828, %v830
    %v832 = vrot.slane %v818, %v831
    %v833 = vcombine.low %v777, %v793
    %v834 = vcombine.high %v777, %v793
    %v836 = vunpack.c.l.s4 1934713408
    %v837 = vunpack.c.0.s8 %v836
    %v838 = vlaneseq
    %v839 = vshrl.u32 %v838, 7
    %v840 = vsub.s32 %v837, %v839
    %v841 = vrot.slane %v833, %v840
    %v843 = vunpack.c.l.s4 1934713408
    %v844 = vunpack.c.0.s8 %v843
    %v845 = vlaneseq
    %v846 = vshrl.u32 %v845, 7
    %v847 = vsub.s32 %v844, %v846
    %v848 = vrot.slane %v834, %v847
    %v849 = vcombine.low %v784, %v800
    %v850 = vcombine.high %v784, %v800
    %v852 = vunpack.c.l.s4 1934713408
    %v853 = vunpack.c.0.s8 %v852
    %v854 = vlaneseq
    %v855 = vshrl.u32 %v854, 7
    %v856 = vsub.s32 %v853, %v855
    %v857 = vrot.slane %v849, %v856
    %v859 = vunpack.c.l.s4 1934713408
    %v860 = vunpack.c.0.s8 %v859
    %v861 = vlaneseq
    %v862 = vshrl.u32 %v861, 7
    %v863 = vsub.s32 %v860, %v862
    %v864 = vrot.slane %v850, %v863
    %v865 = vcombine.low %v809, %v825
    %v866 = vcombine.high %v809, %v825
    %v868 = vunpack.c.l.s4 1934713408
    %v869 = vunpack.c.0.s8 %v868
    %v870 = vlaneseq
    %v871 = vshrl.u32 %v870, 7
    %v872 = vsub.s32 %v869, %v871
    %v873 = vrot.slane %v865, %v872
    %v875 = vunpack.c.l.s4 1934713408
    %v876 = vunpack.c.0.s8 %v875
    %v877 = vlaneseq
    %v878 = vshrl.u32 %v877, 7
    %v879 = vsub.s32 %v876, %v878
    %v880 = vrot.slane %v866, %v879
    %v881 = vcombine.low %v816, %v832
    %v882 = vcombine.high %v816, %v832
    %v884 = vunpack.c.l.s4 1934713408
    %v885 = vunpack.c.0.s8 %v884
    %v886 = vlaneseq
    %v887 = vshrl.u32 %v886, 7
    %v888 = vsub.s32 %v885, %v887
    %v889 = vrot.slane %v881, %v888
    %v891 = vunpack.c.l.s4 1934713408
    %v892 = vunpack.c.0.s8 %v891
    %v893 = vlaneseq
    %v894 = vshrl.u32 %v893, 7
    %v895 = vsub.s32 %v892, %v894
    %v896 = vrot.slane %v882, %v895
    %v897 = vcombine.low %v841, %v873
    %v898 = vcombine.high %v841, %v873
    %v899 = vcombine.low %v848, %v880
    %v900 = vcombine.high %v848, %v880
    %v901 = vcombine.low %v857, %v889
    %v902 = vcombine.high %v857, %v889
    %v903 = vcombine.low %v864, %v896
    %v904 = vcombine.high %v864, %v896
    %v905 = vcombine.low %v401, %v408
    %v907 = vunpack.c.l.s4 1983009808
    %v908 = vunpack.c.0.s8 %v907
    %v909 = vlaneseq
    %v910 = vshrl.u32 %v909, 7
    %v911 = vsub.s32 %v908, %v910
    %v912 = vrot.slane %v905, %v911
    %v913 = vcombine.low %v425, %v426
    %v915 = vunpack.c.l.s4 1983009808
    %v916 = vunpack.c.0.s8 %v915
    %v917 = vlaneseq
    %v918 = vshrl.u32 %v917, 7
    %v919 = vsub.s32 %v916, %v918
    %v920 = vrot.slane %v913, %v919
    %v921 = vcombine.low %v417, %v424
    %v923 = vunpack.c.l.s4 1983009808
    %v924 = vunpack.c.0.s8 %v923
    %v925 = vlaneseq
    %v926 = vshrl.u32 %v925, 7
    %v927 = vsub.s32 %v924, %v926
    %v928 = vrot.slane %v921, %v927
    %v929 = vcombine.low %v427, %v428
    %v931 = vunpack.c.l.s4 1983009808
    %v932 = vunpack.c.0.s8 %v931
    %v933 = vlaneseq
    %v934 = vshrl.u32 %v933, 7
    %v935 = vsub.s32 %v932, %v934
    %v936 = vrot.slane %v929, %v935
    %v937 = vcombine.low %v912, %v920
    %v938 = vcombine.high %v912, %v920
    %v940 = vunpack.c.l.s4 1934713408
    %v941 = vunpack.c.0.s8 %v940
    %v942 = vlaneseq
    %v943 = vshrl.u32 %v942, 7
    %v944 = vsub.s32 %v941, %v943
    %v945 = vrot.slane %v937, %v944
    %v947 = vunpack.c.l.s4 1934713408
    %v948 = vunpack.c.0.s8 %v947
    %v949 = vlaneseq
    %v950 = vshrl.u32 %v949, 7
    %v951 = vsub.s32 %v948, %v950
    %v952 = vrot.slane %v938, %v951
    %v953 = vcombine.low %v928, %v936
    %v954 = vcombine.high %v928, %v936
    %v956 = vunpack.c.l.s4 1934713408
    %v957 = vunpack.c.0.s8 %v956
    %v958 = vlaneseq
    %v959 = vshrl.u32 %v958, 7
    %v960 = vsub.s32 %v957, %v959
    %v961 = vrot.slane %v953, %v960
    %v963 = vunpack.c.l.s4 1934713408
    %v964 = vunpack.c.0.s8 %v963
    %v965 = vlaneseq
    %v966 = vshrl.u32 %v965, 7
    %v967 = vsub.s32 %v964, %v966
    %v968 = vrot.slane %v954, %v967
    %v969 = vcombine.low %v945, %v961
    %v970 = vcombine.high %v945, %v961
    %v971 = vcombine.low %v952, %v968
    %v972 = vcombine.high %v952, %v968
    %v973 = vcombine.low %v605, %v612
    %v975 = vunpack.c.l.s4 1983009808
    %v976 = vunpack.c.0.s8 %v975
    %v977 = vlaneseq
    %v978 = vshrl.u32 %v977, 7
    %v979 = vsub.s32 %v976, %v978
    %v980 = vrot.slane %v973, %v979
    %v981 = vcombine.low %v629, %v630
    %v983 = vunpack.c.l.s4 1983009808
    %v984 = vunpack.c.0.s8 %v983
    %v985 = vlaneseq
    %v986 = vshrl.u32 %v985, 7
    %v987 = vsub.s32 %v984, %v986
    %v988 = vrot.slane %v981, %v987
    %v989 = vcombine.low %v621, %v628
    %v991 = vunpack.c.l.s4 1983009808
    %v992 = vunpack.c.0.s8 %v991
    %v993 = vlaneseq
    %v994 = vshrl.u32 %v993, 7
    %v995 = vsub.s32 %v992, %v994
    %v996 = vrot.slane %v989, %v995
    %v997 = vcombine.low %v631, %v632
    %v999 = vunpack.c.l.s4 1983009808
    %v1000 = vunpack.c.0.s8 %v999
    %v1001 = vlaneseq
    %v1002 = vshrl.u32 %v1001, 7
    %v1003 = vsub.s32 %v1000, %v1002
    %v1004 = vrot.slane %v997, %v1003
    %v1005 = vcombine.low %v980, %v988
    %v1006 = vcombine.high %v980, %v988
    %v1008 = vunpack.c.l.s4 1934713408
    %v1009 = vunpack.c.0.s8 %v1008
    %v1010 = vlaneseq
    %v1011 = vshrl.u32 %v1010, 7
    %v1012 = vsub.s32 %v1009, %v1011
    %v1013 = vrot.slane %v1005, %v1012
    %v1015 = vunpack.c.l.s4 1934713408
    %v1016 = vunpack.c.0.s8 %v1015
    %v1017 = vlaneseq
    %v1018 = vshrl.u32 %v1017, 7
    %v1019 = vsub.s32 %v1016, %v1018
    %v1020 = vrot.slane %v1006, %v1019
    %v1021 = vcombine.low %v996, %v1004
    %v1022 = vcombine.high %v996, %v1004
    %v1024 = vunpack.c.l.s4 1934713408
    %v1025 = vunpack.c.0.s8 %v1024
    %v1026 = vlaneseq
    %v1027 = vshrl.u32 %v1026, 7
    %v1028 = vsub.s32 %v1025, %v1027
    %v1029 = vrot.slane %v1021, %v1028
    %v1031 = vunpack.c.l.s4 1934713408
    %v1032 = vunpack.c.0.s8 %v1031
    %v1033 = vlaneseq
    %v1034 = vshrl.u32 %v1033, 7
    %v1035 = vsub.s32 %v1032, %v1034
    %v1036 = vrot.slane %v1022, %v1035
    %v1037 = vcombine.low %v1013, %v1029
    %v1038 = vcombine.high %v1013, %v1029
    %v1039 = vcombine.low %v1020, %v1036
    %v1040 = vcombine.high %v1020, %v1036
    %v1041 = vmul.f32 %v761, 0.35355338
    %v1042 = vmul.f32 %v897, 0.35355338
    %v1043 = vmul.f32 %v762, 0.35355338
    %v1044 = vmul.f32 %v898, 0.35355338
    %v1045 = vmul.f32 %v763, 0.35355338
    %v1046 = vmul.f32 %v899, 0.35355338
    %v1047 = vmul.f32 %v764, 0.35355338
    %v1048 = vmul.f32 %v900, 0.35355338
    %vm1049 = vcmask 64512
    %v1051 = vsel %vm1049, %v1041, 0
    %v1054 = vsel %vm1049, %v765, 0
    %1056 = vmatprep.subr.mxu0 0.0
    %1057 = vmatpush1.xpose.msra.mxu0 %v1054
    %1058 = vmatprep.subr.mxu0 0.0
    %1059 = vmatpush1.xpose.msra.mxu0 0.0
    %1060 = vmatprep.subr.mxu0 0.0
    %1061 = vmatpush1.xpose.msra.mxu0 0.0
    %1062 = vmatprep.subr.mxu0 0.0
    %1063 = vmatpush1.xpose.msra.mxu0 0.0
    %1064 = vmatprep.subr.mxu0 0.0
    %1065 = vmatpush1.xpose.msra.mxu0 0.0
    %1066 = vmatprep.subr.mxu0 0.0
    %1067 = vmatpush1.xpose.msra.mxu0 0.0
    %1068 = vmatprep.subr.mxu0 0.0
    %1069 = vmatpush1.xpose.msra.mxu0 0.0
    %1070 = vmatprep.subr.mxu0 0.0
    %1071 = vmatpush1.xpose.msra.mxu0 0.0
    %1072 = vmatprep.subr.mxu0 0.0
    %1073 = vmatpush1.xpose.msra.mxu0 0.0
    %1074 = vmatprep.subr.mxu0 0.0
    %1075 = vmatpush1.xpose.msra.mxu0 0.0
    %1076 = vmatprep.subr.mxu0 0.0
    %1077 = vmatpush1.xpose.msra.mxu0 0.0
    %1078 = vmatprep.subr.mxu0 0.0
    %1079 = vmatpush1.xpose.msra.mxu0 0.0
    %1080 = vmatprep.subr.mxu0 0.0
    %1081 = vmatpush1.xpose.msra.mxu0 0.0
    %1082 = vmatprep.subr.mxu0 0.0
    %1083 = vmatpush1.xpose.msra.mxu0 0.0
    %1084 = vmatprep.subr.mxu0 0.0
    %1085 = vmatpush1.xpose.msra.mxu0 0.0
    %1086 = vmatprep.subr.mxu0 0.0
    %1087 = vmatpush1.xpose.msra.mxu0 0.0
    %1088 = vmatprep.subr.mxu0 0.0
    %1089 = vmatpush1.xpose.msra.mxu0 0.0
    %1090 = vmatprep.subr.mxu0 0.0
    %1091 = vmatpush1.xpose.msra.mxu0 0.0
    %1092 = vmatprep.subr.mxu0 0.0
    %1093 = vmatpush1.xpose.msra.mxu0 0.0
    %1094 = vmatprep.subr.mxu0 0.0
    %1095 = vmatpush1.xpose.msra.mxu0 0.0
    %1096 = vmatprep.subr.mxu0 0.0
    %1097 = vmatpush1.xpose.msra.mxu0 0.0
    %1098 = vmatprep.subr.mxu0 0.0
    %1099 = vmatpush1.xpose.msra.mxu0 0.0
    %1100 = vmatprep.subr.mxu0 0.0
    %1101 = vmatpush1.xpose.msra.mxu0 0.0
    %1102 = vmatprep.subr.mxu0 0.0
    %1103 = vmatpush1.xpose.msra.mxu0 0.0
    %1104 = vmatprep.subr.mxu0 0.0
    %1105 = vmatpush1.xpose.msra.mxu0 0.0
    %1106 = vmatprep.subr.mxu0 0.0
    %1107 = vmatpush1.xpose.msra.mxu0 0.0
    %1108 = vmatprep.subr.mxu0 0.0
    %1109 = vmatpush1.xpose.msra.mxu0 0.0
    %1110 = vmatprep.subr.mxu0 0.0
    %1111 = vmatpush1.xpose.msra.mxu0 0.0
    %1112 = vmatprep.subr.mxu0 0.0
    %1113 = vmatpush1.xpose.msra.mxu0 0.0
    %1114 = vmatprep.subr.mxu0 0.0
    %1115 = vmatpush1.xpose.msra.mxu0 0.0
    %1116 = vmatprep.subr.mxu0 0.0
    %1117 = vmatpush1.xpose.msra.mxu0 0.0
    %1118 = vmatprep.subr.mxu0 0.0
    %1119 = vmatpush1.xpose.msra.mxu0 0.0
    %1120 = vmatprep.mubr.f32.mxu0 0.0
    %1121 = vmatmul.mubr.f32.gmra.mrb[0].mxu0 %v1051
    %v1122 = vpop.f32.mrb[0].mxu0
    %v1123 = vadd.f32 0.0, %v1122
    %v1124 = vpop.f32.mrb[0].mxu0
    %1125 = vdwg.mxu0
    %v1127 = vsel %vm1049, %v1042, 0
    %v1130 = vsel %vm1049, %v901, 0
    %1132 = vmatprep.subr.mxu0 0.0
    %1133 = vmatpush1.xpose.msra.mxu0 %v1130
    %1134 = vmatprep.subr.mxu0 0.0
    %1135 = vmatpush1.xpose.msra.mxu0 0.0
    %1136 = vmatprep.subr.mxu0 0.0
    %1137 = vmatpush1.xpose.msra.mxu0 0.0
    %1138 = vmatprep.subr.mxu0 0.0
    %1139 = vmatpush1.xpose.msra.mxu0 0.0
    %1140 = vmatprep.subr.mxu0 0.0
    %1141 = vmatpush1.xpose.msra.mxu0 0.0
    %1142 = vmatprep.subr.mxu0 0.0
    %1143 = vmatpush1.xpose.msra.mxu0 0.0
    %1144 = vmatprep.subr.mxu0 0.0
    %1145 = vmatpush1.xpose.msra.mxu0 0.0
    %1146 = vmatprep.subr.mxu0 0.0
    %1147 = vmatpush1.xpose.msra.mxu0 0.0
    %1148 = vmatprep.subr.mxu0 0.0
    %1149 = vmatpush1.xpose.msra.mxu0 0.0
    %1150 = vmatprep.subr.mxu0 0.0
    %1151 = vmatpush1.xpose.msra.mxu0 0.0
    %1152 = vmatprep.subr.mxu0 0.0
    %1153 = vmatpush1.xpose.msra.mxu0 0.0
    %1154 = vmatprep.subr.mxu0 0.0
    %1155 = vmatpush1.xpose.msra.mxu0 0.0
    %1156 = vmatprep.subr.mxu0 0.0
    %1157 = vmatpush1.xpose.msra.mxu0 0.0
    %1158 = vmatprep.subr.mxu0 0.0
    %1159 = vmatpush1.xpose.msra.mxu0 0.0
    %1160 = vmatprep.subr.mxu0 0.0
    %1161 = vmatpush1.xpose.msra.mxu0 0.0
    %1162 = vmatprep.subr.mxu0 0.0
    %1163 = vmatpush1.xpose.msra.mxu0 0.0
    %1164 = vmatprep.subr.mxu0 0.0
    %1165 = vmatpush1.xpose.msra.mxu0 0.0
    %1166 = vmatprep.subr.mxu0 0.0
    %1167 = vmatpush1.xpose.msra.mxu0 0.0
    %1168 = vmatprep.subr.mxu0 0.0
    %1169 = vmatpush1.xpose.msra.mxu0 0.0
    %1170 = vmatprep.subr.mxu0 0.0
    %1171 = vmatpush1.xpose.msra.mxu0 0.0
    %1172 = vmatprep.subr.mxu0 0.0
    %1173 = vmatpush1.xpose.msra.mxu0 0.0
    %1174 = vmatprep.subr.mxu0 0.0
    %1175 = vmatpush1.xpose.msra.mxu0 0.0
    %1176 = vmatprep.subr.mxu0 0.0
    %1177 = vmatpush1.xpose.msra.mxu0 0.0
    %1178 = vmatprep.subr.mxu0 0.0
    %1179 = vmatpush1.xpose.msra.mxu0 0.0
    %1180 = vmatprep.subr.mxu0 0.0
    %1181 = vmatpush1.xpose.msra.mxu0 0.0
    %1182 = vmatprep.subr.mxu0 0.0
    %1183 = vmatpush1.xpose.msra.mxu0 0.0
    %1184 = vmatprep.subr.mxu0 0.0
    %1185 = vmatpush1.xpose.msra.mxu0 0.0
    %1186 = vmatprep.subr.mxu0 0.0
    %1187 = vmatpush1.xpose.msra.mxu0 0.0
    %1188 = vmatprep.subr.mxu0 0.0
    %1189 = vmatpush1.xpose.msra.mxu0 0.0
    %1190 = vmatprep.subr.mxu0 0.0
    %1191 = vmatpush1.xpose.msra.mxu0 0.0
    %1192 = vmatprep.subr.mxu0 0.0
    %1193 = vmatpush1.xpose.msra.mxu0 0.0
    %1194 = vmatprep.subr.mxu0 0.0
    %1195 = vmatpush1.xpose.msra.mxu0 0.0
    %1196 = vmatprep.mubr.f32.mxu0 0.0
    %1197 = vmatmul.mubr.f32.gmra.mrb[0].mxu0 %v1127
    %v1198 = vpop.f32.mrb[0].mxu0
    %v1199 = vadd.f32 0.0, %v1198
    %v1200 = vpop.f32.mrb[0].mxu0
    %1201 = vdwg.mxu0
    %v1203 = vsel %vm1049, %v1043, 0
    %v1206 = vsel %vm1049, %v766, 0
    %1208 = vmatprep.subr.mxu0 0.0
    %1209 = vmatpush1.xpose.msra.mxu0 %v1206
    %1210 = vmatprep.subr.mxu0 0.0
    %1211 = vmatpush1.xpose.msra.mxu0 0.0
    %1212 = vmatprep.subr.mxu0 0.0
    %1213 = vmatpush1.xpose.msra.mxu0 0.0
    %1214 = vmatprep.subr.mxu0 0.0
    %1215 = vmatpush1.xpose.msra.mxu0 0.0
    %1216 = vmatprep.subr.mxu0 0.0
    %1217 = vmatpush1.xpose.msra.mxu0 0.0
    %1218 = vmatprep.subr.mxu0 0.0
    %1219 = vmatpush1.xpose.msra.mxu0 0.0
    %1220 = vmatprep.subr.mxu0 0.0
    %1221 = vmatpush1.xpose.msra.mxu0 0.0
    %1222 = vmatprep.subr.mxu0 0.0
    %1223 = vmatpush1.xpose.msra.mxu0 0.0
    %1224 = vmatprep.subr.mxu0 0.0
    %1225 = vmatpush1.xpose.msra.mxu0 0.0
    %1226 = vmatprep.subr.mxu0 0.0
    %1227 = vmatpush1.xpose.msra.mxu0 0.0
    %1228 = vmatprep.subr.mxu0 0.0
    %1229 = vmatpush1.xpose.msra.mxu0 0.0
    %1230 = vmatprep.subr.mxu0 0.0
    %1231 = vmatpush1.xpose.msra.mxu0 0.0
    %1232 = vmatprep.subr.mxu0 0.0
    %1233 = vmatpush1.xpose.msra.mxu0 0.0
    %1234 = vmatprep.subr.mxu0 0.0
    %1235 = vmatpush1.xpose.msra.mxu0 0.0
    %1236 = vmatprep.subr.mxu0 0.0
    %1237 = vmatpush1.xpose.msra.mxu0 0.0
    %1238 = vmatprep.subr.mxu0 0.0
    %1239 = vmatpush1.xpose.msra.mxu0 0.0
    %1240 = vmatprep.subr.mxu0 0.0
    %1241 = vmatpush1.xpose.msra.mxu0 0.0
    %1242 = vmatprep.subr.mxu0 0.0
    %1243 = vmatpush1.xpose.msra.mxu0 0.0
    %1244 = vmatprep.subr.mxu0 0.0
    %1245 = vmatpush1.xpose.msra.mxu0 0.0
    %1246 = vmatprep.subr.mxu0 0.0
    %1247 = vmatpush1.xpose.msra.mxu0 0.0
    %1248 = vmatprep.subr.mxu0 0.0
    %1249 = vmatpush1.xpose.msra.mxu0 0.0
    %1250 = vmatprep.subr.mxu0 0.0
    %1251 = vmatpush1.xpose.msra.mxu0 0.0
    %1252 = vmatprep.subr.mxu0 0.0
    %1253 = vmatpush1.xpose.msra.mxu0 0.0
    %1254 = vmatprep.subr.mxu0 0.0
    %1255 = vmatpush1.xpose.msra.mxu0 0.0
    %1256 = vmatprep.subr.mxu0 0.0
    %1257 = vmatpush1.xpose.msra.mxu0 0.0
    %1258 = vmatprep.subr.mxu0 0.0
    %1259 = vmatpush1.xpose.msra.mxu0 0.0
    %1260 = vmatprep.subr.mxu0 0.0
    %1261 = vmatpush1.xpose.msra.mxu0 0.0
    %1262 = vmatprep.subr.mxu0 0.0
    %1263 = vmatpush1.xpose.msra.mxu0 0.0
    %1264 = vmatprep.subr.mxu0 0.0
    %1265 = vmatpush1.xpose.msra.mxu0 0.0
    %1266 = vmatprep.subr.mxu0 0.0
    %1267 = vmatpush1.xpose.msra.mxu0 0.0
    %1268 = vmatprep.subr.mxu0 0.0
    %1269 = vmatpush1.xpose.msra.mxu0 0.0
    %1270 = vmatprep.subr.mxu0 0.0
    %1271 = vmatpush1.xpose.msra.mxu0 0.0
    %1272 = vmatprep.mubr.f32.mxu0 0.0
    %1273 = vmatmul.mubr.f32.gmra.mrb[0].mxu0 %v1203
    %v1274 = vpop.f32.mrb[0].mxu0
    %v1275 = vadd.f32 0.0, %v1274
    %v1276 = vpop.f32.mrb[0].mxu0
    %1277 = vdwg.mxu0
    %v1279 = vsel %vm1049, %v1044, 0
    %v1282 = vsel %vm1049, %v902, 0
    %1284 = vmatprep.subr.mxu0 0.0
    %1285 = vmatpush1.xpose.msra.mxu0 %v1282
    %1286 = vmatprep.subr.mxu0 0.0
    %1287 = vmatpush1.xpose.msra.mxu0 0.0
    %1288 = vmatprep.subr.mxu0 0.0
    %1289 = vmatpush1.xpose.msra.mxu0 0.0
    %1290 = vmatprep.subr.mxu0 0.0
    %1291 = vmatpush1.xpose.msra.mxu0 0.0
    %1292 = vmatprep.subr.mxu0 0.0
    %1293 = vmatpush1.xpose.msra.mxu0 0.0
    %1294 = vmatprep.subr.mxu0 0.0
    %1295 = vmatpush1.xpose.msra.mxu0 0.0
    %1296 = vmatprep.subr.mxu0 0.0
    %1297 = vmatpush1.xpose.msra.mxu0 0.0
    %1298 = vmatprep.subr.mxu0 0.0
    %1299 = vmatpush1.xpose.msra.mxu0 0.0
    %1300 = vmatprep.subr.mxu0 0.0
    %1301 = vmatpush1.xpose.msra.mxu0 0.0
    %1302 = vmatprep.subr.mxu0 0.0
    %1303 = vmatpush1.xpose.msra.mxu0 0.0
    %1304 = vmatprep.subr.mxu0 0.0
    %1305 = vmatpush1.xpose.msra.mxu0 0.0
    %1306 = vmatprep.subr.mxu0 0.0
    %1307 = vmatpush1.xpose.msra.mxu0 0.0
    %1308 = vmatprep.subr.mxu0 0.0
    %1309 = vmatpush1.xpose.msra.mxu0 0.0
    %1310 = vmatprep.subr.mxu0 0.0
    %1311 = vmatpush1.xpose.msra.mxu0 0.0
    %1312 = vmatprep.subr.mxu0 0.0
    %1313 = vmatpush1.xpose.msra.mxu0 0.0
    %1314 = vmatprep.subr.mxu0 0.0
    %1315 = vmatpush1.xpose.msra.mxu0 0.0
    %1316 = vmatprep.subr.mxu0 0.0
    %1317 = vmatpush1.xpose.msra.mxu0 0.0
    %1318 = vmatprep.subr.mxu0 0.0
    %1319 = vmatpush1.xpose.msra.mxu0 0.0
    %1320 = vmatprep.subr.mxu0 0.0
    %1321 = vmatpush1.xpose.msra.mxu0 0.0
    %1322 = vmatprep.subr.mxu0 0.0
    %1323 = vmatpush1.xpose.msra.mxu0 0.0
    %1324 = vmatprep.subr.mxu0 0.0
    %1325 = vmatpush1.xpose.msra.mxu0 0.0
    %1326 = vmatprep.subr.mxu0 0.0
    %1327 = vmatpush1.xpose.msra.mxu0 0.0
    %1328 = vmatprep.subr.mxu0 0.0
    %1329 = vmatpush1.xpose.msra.mxu0 0.0
    %1330 = vmatprep.subr.mxu0 0.0
    %1331 = vmatpush1.xpose.msra.mxu0 0.0
    %1332 = vmatprep.subr.mxu0 0.0
    %1333 = vmatpush1.xpose.msra.mxu0 0.0
    %1334 = vmatprep.subr.mxu0 0.0
    %1335 = vmatpush1.xpose.msra.mxu0 0.0
    %1336 = vmatprep.subr.mxu0 0.0
    %1337 = vmatpush1.xpose.msra.mxu0 0.0
    %1338 = vmatprep.subr.mxu0 0.0
    %1339 = vmatpush1.xpose.msra.mxu0 0.0
    %1340 = vmatprep.subr.mxu0 0.0
    %1341 = vmatpush1.xpose.msra.mxu0 0.0
    %1342 = vmatprep.subr.mxu0 0.0
    %1343 = vmatpush1.xpose.msra.mxu0 0.0
    %1344 = vmatprep.subr.mxu0 0.0
    %1345 = vmatpush1.xpose.msra.mxu0 0.0
    %1346 = vmatprep.subr.mxu0 0.0
    %1347 = vmatpush1.xpose.msra.mxu0 0.0
    %1348 = vmatprep.mubr.f32.mxu0 0.0
    %1349 = vmatmul.mubr.f32.gmra.mrb[0].mxu0 %v1279
    %v1350 = vpop.f32.mrb[0].mxu0
    %v1351 = vadd.f32 0.0, %v1350
    %v1352 = vpop.f32.mrb[0].mxu0
    %1353 = vdwg.mxu0
    %v1355 = vsel %vm1049, %v1045, 0
    %v1358 = vsel %vm1049, %v767, 0
    %1360 = vmatprep.subr.mxu0 0.0
    %1361 = vmatpush1.xpose.msra.mxu0 %v1358
    %1362 = vmatprep.subr.mxu0 0.0
    %1363 = vmatpush1.xpose.msra.mxu0 0.0
    %1364 = vmatprep.subr.mxu0 0.0
    %1365 = vmatpush1.xpose.msra.mxu0 0.0
    %1366 = vmatprep.subr.mxu0 0.0
    %1367 = vmatpush1.xpose.msra.mxu0 0.0
    %1368 = vmatprep.subr.mxu0 0.0
    %1369 = vmatpush1.xpose.msra.mxu0 0.0
    %1370 = vmatprep.subr.mxu0 0.0
    %1371 = vmatpush1.xpose.msra.mxu0 0.0
    %1372 = vmatprep.subr.mxu0 0.0
    %1373 = vmatpush1.xpose.msra.mxu0 0.0
    %1374 = vmatprep.subr.mxu0 0.0
    %1375 = vmatpush1.xpose.msra.mxu0 0.0
    %1376 = vmatprep.subr.mxu0 0.0
    %1377 = vmatpush1.xpose.msra.mxu0 0.0
    %1378 = vmatprep.subr.mxu0 0.0
    %1379 = vmatpush1.xpose.msra.mxu0 0.0
    %1380 = vmatprep.subr.mxu0 0.0
    %1381 = vmatpush1.xpose.msra.mxu0 0.0
    %1382 = vmatprep.subr.mxu0 0.0
    %1383 = vmatpush1.xpose.msra.mxu0 0.0
    %1384 = vmatprep.subr.mxu0 0.0
    %1385 = vmatpush1.xpose.msra.mxu0 0.0
    %1386 = vmatprep.subr.mxu0 0.0
    %1387 = vmatpush1.xpose.msra.mxu0 0.0
    %1388 = vmatprep.subr.mxu0 0.0
    %1389 = vmatpush1.xpose.msra.mxu0 0.0
    %1390 = vmatprep.subr.mxu0 0.0
    %1391 = vmatpush1.xpose.msra.mxu0 0.0
    %1392 = vmatprep.subr.mxu0 0.0
    %1393 = vmatpush1.xpose.msra.mxu0 0.0
    %1394 = vmatprep.subr.mxu0 0.0
    %1395 = vmatpush1.xpose.msra.mxu0 0.0
    %1396 = vmatprep.subr.mxu0 0.0
    %1397 = vmatpush1.xpose.msra.mxu0 0.0
    %1398 = vmatprep.subr.mxu0 0.0
    %1399 = vmatpush1.xpose.msra.mxu0 0.0
    %1400 = vmatprep.subr.mxu0 0.0
    %1401 = vmatpush1.xpose.msra.mxu0 0.0
    %1402 = vmatprep.subr.mxu0 0.0
    %1403 = vmatpush1.xpose.msra.mxu0 0.0
    %1404 = vmatprep.subr.mxu0 0.0
    %1405 = vmatpush1.xpose.msra.mxu0 0.0
    %1406 = vmatprep.subr.mxu0 0.0
    %1407 = vmatpush1.xpose.msra.mxu0 0.0
    %1408 = vmatprep.subr.mxu0 0.0
    %1409 = vmatpush1.xpose.msra.mxu0 0.0
    %1410 = vmatprep.subr.mxu0 0.0
    %1411 = vmatpush1.xpose.msra.mxu0 0.0
    %1412 = vmatprep.subr.mxu0 0.0
    %1413 = vmatpush1.xpose.msra.mxu0 0.0
    %1414 = vmatprep.subr.mxu0 0.0
    %1415 = vmatpush1.xpose.msra.mxu0 0.0
    %1416 = vmatprep.subr.mxu0 0.0
    %1417 = vmatpush1.xpose.msra.mxu0 0.0
    %1418 = vmatprep.subr.mxu0 0.0
    %1419 = vmatpush1.xpose.msra.mxu0 0.0
    %1420 = vmatprep.subr.mxu0 0.0
    %1421 = vmatpush1.xpose.msra.mxu0 0.0
    %1422 = vmatprep.subr.mxu0 0.0
    %1423 = vmatpush1.xpose.msra.mxu0 0.0
    %1424 = vmatprep.mubr.f32.mxu0 0.0
    %1425 = vmatmul.mubr.f32.gmra.mrb[0].mxu0 %v1355
    %v1426 = vpop.f32.mrb[0].mxu0
    %v1427 = vadd.f32 0.0, %v1426
    %v1428 = vpop.f32.mrb[0].mxu0
    %1429 = vdwg.mxu0
    %v1431 = vsel %vm1049, %v1046, 0
    %v1434 = vsel %vm1049, %v903, 0
    %1436 = vmatprep.subr.mxu0 0.0
    %1437 = vmatpush1.xpose.msra.mxu0 %v1434
    %1438 = vmatprep.subr.mxu0 0.0
    %1439 = vmatpush1.xpose.msra.mxu0 0.0
    %1440 = vmatprep.subr.mxu0 0.0
    %1441 = vmatpush1.xpose.msra.mxu0 0.0
    %1442 = vmatprep.subr.mxu0 0.0
    %1443 = vmatpush1.xpose.msra.mxu0 0.0
    %1444 = vmatprep.subr.mxu0 0.0
    %1445 = vmatpush1.xpose.msra.mxu0 0.0
    %1446 = vmatprep.subr.mxu0 0.0
    %1447 = vmatpush1.xpose.msra.mxu0 0.0
    %1448 = vmatprep.subr.mxu0 0.0
    %1449 = vmatpush1.xpose.msra.mxu0 0.0
    %1450 = vmatprep.subr.mxu0 0.0
    %1451 = vmatpush1.xpose.msra.mxu0 0.0
    %1452 = vmatprep.subr.mxu0 0.0
    %1453 = vmatpush1.xpose.msra.mxu0 0.0
    %1454 = vmatprep.subr.mxu0 0.0
    %1455 = vmatpush1.xpose.msra.mxu0 0.0
    %1456 = vmatprep.subr.mxu0 0.0
    %1457 = vmatpush1.xpose.msra.mxu0 0.0
    %1458 = vmatprep.subr.mxu0 0.0
    %1459 = vmatpush1.xpose.msra.mxu0 0.0
    %1460 = vmatprep.subr.mxu0 0.0
    %1461 = vmatpush1.xpose.msra.mxu0 0.0
    %1462 = vmatprep.subr.mxu0 0.0
    %1463 = vmatpush1.xpose.msra.mxu0 0.0
    %1464 = vmatprep.subr.mxu0 0.0
    %1465 = vmatpush1.xpose.msra.mxu0 0.0
    %1466 = vmatprep.subr.mxu0 0.0
    %1467 = vmatpush1.xpose.msra.mxu0 0.0
    %1468 = vmatprep.subr.mxu0 0.0
    %1469 = vmatpush1.xpose.msra.mxu0 0.0
    %1470 = vmatprep.subr.mxu0 0.0
    %1471 = vmatpush1.xpose.msra.mxu0 0.0
    %1472 = vmatprep.subr.mxu0 0.0
    %1473 = vmatpush1.xpose.msra.mxu0 0.0
    %1474 = vmatprep.subr.mxu0 0.0
    %1475 = vmatpush1.xpose.msra.mxu0 0.0
    %1476 = vmatprep.subr.mxu0 0.0
    %1477 = vmatpush1.xpose.msra.mxu0 0.0
    %1478 = vmatprep.subr.mxu0 0.0
    %1479 = vmatpush1.xpose.msra.mxu0 0.0
    %1480 = vmatprep.subr.mxu0 0.0
    %1481 = vmatpush1.xpose.msra.mxu0 0.0
    %1482 = vmatprep.subr.mxu0 0.0
    %1483 = vmatpush1.xpose.msra.mxu0 0.0
    %1484 = vmatprep.subr.mxu0 0.0
    %1485 = vmatpush1.xpose.msra.mxu0 0.0
    %1486 = vmatprep.subr.mxu0 0.0
    %1487 = vmatpush1.xpose.msra.mxu0 0.0
    %1488 = vmatprep.subr.mxu0 0.0
    %1489 = vmatpush1.xpose.msra.mxu0 0.0
    %1490 = vmatprep.subr.mxu0 0.0
    %1491 = vmatpush1.xpose.msra.mxu0 0.0
    %1492 = vmatprep.subr.mxu0 0.0
    %1493 = vmatpush1.xpose.msra.mxu0 0.0
    %1494 = vmatprep.subr.mxu0 0.0
    %1495 = vmatpush1.xpose.msra.mxu0 0.0
    %1496 = vmatprep.subr.mxu0 0.0
    %1497 = vmatpush1.xpose.msra.mxu0 0.0
    %1498 = vmatprep.subr.mxu0 0.0
    %1499 = vmatpush1.xpose.msra.mxu0 0.0
    %1500 = vmatprep.mubr.f32.mxu0 0.0
    %1501 = vmatmul.mubr.f32.gmra.mrb[0].mxu0 %v1431
    %v1502 = vpop.f32.mrb[0].mxu0
    %v1503 = vadd.f32 0.0, %v1502
    %v1504 = vpop.f32.mrb[0].mxu0
    %1505 = vdwg.mxu0
    %v1507 = vsel %vm1049, %v1047, 0
    %v1510 = vsel %vm1049, %v768, 0
    %1512 = vmatprep.subr.mxu0 0.0
    %1513 = vmatpush1.xpose.msra.mxu0 %v1510
    %1514 = vmatprep.subr.mxu0 0.0
    %1515 = vmatpush1.xpose.msra.mxu0 0.0
    %1516 = vmatprep.subr.mxu0 0.0
    %1517 = vmatpush1.xpose.msra.mxu0 0.0
    %1518 = vmatprep.subr.mxu0 0.0
    %1519 = vmatpush1.xpose.msra.mxu0 0.0
    %1520 = vmatprep.subr.mxu0 0.0
    %1521 = vmatpush1.xpose.msra.mxu0 0.0
    %1522 = vmatprep.subr.mxu0 0.0
    %1523 = vmatpush1.xpose.msra.mxu0 0.0
    %1524 = vmatprep.subr.mxu0 0.0
    %1525 = vmatpush1.xpose.msra.mxu0 0.0
    %1526 = vmatprep.subr.mxu0 0.0
    %1527 = vmatpush1.xpose.msra.mxu0 0.0
    %1528 = vmatprep.subr.mxu0 0.0
    %1529 = vmatpush1.xpose.msra.mxu0 0.0
    %1530 = vmatprep.subr.mxu0 0.0
    %1531 = vmatpush1.xpose.msra.mxu0 0.0
    %1532 = vmatprep.subr.mxu0 0.0
    %1533 = vmatpush1.xpose.msra.mxu0 0.0
    %1534 = vmatprep.subr.mxu0 0.0
    %1535 = vmatpush1.xpose.msra.mxu0 0.0
    %1536 = vmatprep.subr.mxu0 0.0
    %1537 = vmatpush1.xpose.msra.mxu0 0.0
    %1538 = vmatprep.subr.mxu0 0.0
    %1539 = vmatpush1.xpose.msra.mxu0 0.0
    %1540 = vmatprep.subr.mxu0 0.0
    %1541 = vmatpush1.xpose.msra.mxu0 0.0
    %1542 = vmatprep.subr.mxu0 0.0
    %1543 = vmatpush1.xpose.msra.mxu0 0.0
    %1544 = vmatprep.subr.mxu0 0.0
    %1545 = vmatpush1.xpose.msra.mxu0 0.0
    %1546 = vmatprep.subr.mxu0 0.0
    %1547 = vmatpush1.xpose.msra.mxu0 0.0
    %1548 = vmatprep.subr.mxu0 0.0
    %1549 = vmatpush1.xpose.msra.mxu0 0.0
    %1550 = vmatprep.subr.mxu0 0.0
    %1551 = vmatpush1.xpose.msra.mxu0 0.0
    %1552 = vmatprep.subr.mxu0 0.0
    %1553 = vmatpush1.xpose.msra.mxu0 0.0
    %1554 = vmatprep.subr.mxu0 0.0
    %1555 = vmatpush1.xpose.msra.mxu0 0.0
    %1556 = vmatprep.subr.mxu0 0.0
    %1557 = vmatpush1.xpose.msra.mxu0 0.0
    %1558 = vmatprep.subr.mxu0 0.0
    %1559 = vmatpush1.xpose.msra.mxu0 0.0
    %1560 = vmatprep.subr.mxu0 0.0
    %1561 = vmatpush1.xpose.msra.mxu0 0.0
    %1562 = vmatprep.subr.mxu0 0.0
    %1563 = vmatpush1.xpose.msra.mxu0 0.0
    %1564 = vmatprep.subr.mxu0 0.0
    %1565 = vmatpush1.xpose.msra.mxu0 0.0
    %1566 = vmatprep.subr.mxu0 0.0
    %1567 = vmatpush1.xpose.msra.mxu0 0.0
    %1568 = vmatprep.subr.mxu0 0.0
    %1569 = vmatpush1.xpose.msra.mxu0 0.0
    %1570 = vmatprep.subr.mxu0 0.0
    %1571 = vmatpush1.xpose.msra.mxu0 0.0
    %1572 = vmatprep.subr.mxu0 0.0
    %1573 = vmatpush1.xpose.msra.mxu0 0.0
    %1574 = vmatprep.subr.mxu0 0.0
    %1575 = vmatpush1.xpose.msra.mxu0 0.0
    %1576 = vmatprep.mubr.f32.mxu0 0.0
    %1577 = vmatmul.mubr.f32.gmra.mrb[0].mxu0 %v1507
    %v1578 = vpop.f32.mrb[0].mxu0
    %v1579 = vadd.f32 0.0, %v1578
    %v1580 = vpop.f32.mrb[0].mxu0
    %1581 = vdwg.mxu0
    %v1583 = vsel %vm1049, %v1048, 0
    %v1586 = vsel %vm1049, %v904, 0
    %1588 = vmatprep.subr.mxu0 0.0
    %1589 = vmatpush1.xpose.msra.mxu0 %v1586
    %1590 = vmatprep.subr.mxu0 0.0
    %1591 = vmatpush1.xpose.msra.mxu0 0.0
    %1592 = vmatprep.subr.mxu0 0.0
    %1593 = vmatpush1.xpose.msra.mxu0 0.0
    %1594 = vmatprep.subr.mxu0 0.0
    %1595 = vmatpush1.xpose.msra.mxu0 0.0
    %1596 = vmatprep.subr.mxu0 0.0
    %1597 = vmatpush1.xpose.msra.mxu0 0.0
    %1598 = vmatprep.subr.mxu0 0.0
    %1599 = vmatpush1.xpose.msra.mxu0 0.0
    %1600 = vmatprep.subr.mxu0 0.0
    %1601 = vmatpush1.xpose.msra.mxu0 0.0
    %1602 = vmatprep.subr.mxu0 0.0
    %1603 = vmatpush1.xpose.msra.mxu0 0.0
    %1604 = vmatprep.subr.mxu0 0.0
    %1605 = vmatpush1.xpose.msra.mxu0 0.0
    %1606 = vmatprep.subr.mxu0 0.0
    %1607 = vmatpush1.xpose.msra.mxu0 0.0
    %1608 = vmatprep.subr.mxu0 0.0
    %1609 = vmatpush1.xpose.msra.mxu0 0.0
    %1610 = vmatprep.subr.mxu0 0.0
    %1611 = vmatpush1.xpose.msra.mxu0 0.0
    %1612 = vmatprep.subr.mxu0 0.0
    %1613 = vmatpush1.xpose.msra.mxu0 0.0
    %1614 = vmatprep.subr.mxu0 0.0
    %1615 = vmatpush1.xpose.msra.mxu0 0.0
    %1616 = vmatprep.subr.mxu0 0.0
    %1617 = vmatpush1.xpose.msra.mxu0 0.0
    %1618 = vmatprep.subr.mxu0 0.0
    %1619 = vmatpush1.xpose.msra.mxu0 0.0
    %1620 = vmatprep.subr.mxu0 0.0
    %1621 = vmatpush1.xpose.msra.mxu0 0.0
    %1622 = vmatprep.subr.mxu0 0.0
    %1623 = vmatpush1.xpose.msra.mxu0 0.0
    %1624 = vmatprep.subr.mxu0 0.0
    %1625 = vmatpush1.xpose.msra.mxu0 0.0
    %1626 = vmatprep.subr.mxu0 0.0
    %1627 = vmatpush1.xpose.msra.mxu0 0.0
    %1628 = vmatprep.subr.mxu0 0.0
    %1629 = vmatpush1.xpose.msra.mxu0 0.0
    %1630 = vmatprep.subr.mxu0 0.0
    %1631 = vmatpush1.xpose.msra.mxu0 0.0
    %1632 = vmatprep.subr.mxu0 0.0
    %1633 = vmatpush1.xpose.msra.mxu0 0.0
    %1634 = vmatprep.subr.mxu0 0.0
    %1635 = vmatpush1.xpose.msra.mxu0 0.0
    %1636 = vmatprep.subr.mxu0 0.0
    %1637 = vmatpush1.xpose.msra.mxu0 0.0
    %1638 = vmatprep.subr.mxu0 0.0
    %1639 = vmatpush1.xpose.msra.mxu0 0.0
    %1640 = vmatprep.subr.mxu0 0.0
    %1641 = vmatpush1.xpose.msra.mxu0 0.0
    %1642 = vmatprep.subr.mxu0 0.0
    %1643 = vmatpush1.xpose.msra.mxu0 0.0
    %1644 = vmatprep.subr.mxu0 0.0
    %1645 = vmatpush1.xpose.msra.mxu0 0.0
    %1646 = vmatprep.subr.mxu0 0.0
    %1647 = vmatpush1.xpose.msra.mxu0 0.0
    %1648 = vmatprep.subr.mxu0 0.0
    %1649 = vmatpush1.xpose.msra.mxu0 0.0
    %1650 = vmatprep.subr.mxu0 0.0
    %1651 = vmatpush1.xpose.msra.mxu0 0.0
    %1652 = vmatprep.mubr.f32.mxu0 0.0
    %1653 = vmatmul.mubr.f32.gmra.mrb[0].mxu0 %v1583
    %v1654 = vpop.f32.mrb[0].mxu0
    %v1655 = vadd.f32 0.0, %v1654
    %v1656 = vpop.f32.mrb[0].mxu0
    %1657 = vdwg.mxu0
    %v1658 = vsel %vm1049, %v1123, -inf
    %1659 = vmax.xlane.f32.xlu0 %v1658
    %v1660 = vpop.xlane.xlu0 %1659
    %v1661 = vsel %vm1049, %v1199, -inf
    %1662 = vmax.xlane.f32.xlu0 %v1661
    %v1663 = vpop.xlane.xlu0 %1662
    %v1664 = vsel %vm1049, %v1275, -inf
    %1665 = vmax.xlane.f32.xlu0 %v1664
    %v1666 = vpop.xlane.xlu0 %1665
    %v1667 = vsel %vm1049, %v1351, -inf
    %1668 = vmax.xlane.f32.xlu0 %v1667
    %v1669 = vpop.xlane.xlu0 %1668
    %v1670 = vsel %vm1049, %v1427, -inf
    %1671 = vmax.xlane.f32.xlu0 %v1670
    %v1672 = vpop.xlane.xlu0 %1671
    %v1673 = vsel %vm1049, %v1503, -inf
    %1674 = vmax.xlane.f32.xlu0 %v1673
    %v1675 = vpop.xlane.xlu0 %1674
    %v1676 = vsel %vm1049, %v1579, -inf
    %1677 = vmax.xlane.f32.xlu0 %v1676
    %v1678 = vpop.xlane.xlu0 %1677
    %v1679 = vsel %vm1049, %v1655, -inf
    %1680 = vmax.xlane.f32.xlu0 %v1679
    %v1681 = vpop.xlane.xlu0 %1680
    %v1682 = vsub.f32 %v1123, %v1660
    %v1683 = vsub.f32 %v1199, %v1663
    %v1684 = vsub.f32 %v1275, %v1666
    %v1685 = vsub.f32 %v1351, %v1669
    %v1686 = vsub.f32 %v1427, %v1672
    %v1687 = vsub.f32 %v1503, %v1675
    %v1688 = vsub.f32 %v1579, %v1678
    %v1689 = vsub.f32 %v1655, %v1681
    %v1690 = vmul.f32 %v1682, 1.442695
    %v1691 = vpow.pop %v1690
    %v1692 = vmul.f32 %v1683, 1.442695
    %v1693 = vpow.pop %v1692
    %v1694 = vmul.f32 %v1684, 1.442695
    %v1695 = vpow.pop %v1694
    %v1696 = vmul.f32 %v1685, 1.442695
    %v1697 = vpow.pop %v1696
    %v1698 = vmul.f32 %v1686, 1.442695
    %v1699 = vpow.pop %v1698
    %v1700 = vmul.f32 %v1687, 1.442695
    %v1701 = vpow.pop %v1700
    %v1702 = vmul.f32 %v1688, 1.442695
    %v1703 = vpow.pop %v1702
    %v1704 = vmul.f32 %v1689, 1.442695
    %v1705 = vpow.pop %v1704
    %v1706 = vsel %vm1049, %v1691, 0.0
    %1707 = vadd.xlane.f32.xlu0 %v1706
    %v1708 = vpop.xlane.xlu0 %1707
    %v1709 = vsel %vm1049, %v1693, 0.0
    %1710 = vadd.xlane.f32.xlu0 %v1709
    %v1711 = vpop.xlane.xlu0 %1710
    %v1712 = vsel %vm1049, %v1695, 0.0
    %1713 = vadd.xlane.f32.xlu0 %v1712
    %v1714 = vpop.xlane.xlu0 %1713
    %v1715 = vsel %vm1049, %v1697, 0.0
    %1716 = vadd.xlane.f32.xlu0 %v1715
    %v1717 = vpop.xlane.xlu0 %1716
    %v1718 = vsel %vm1049, %v1699, 0.0
    %1719 = vadd.xlane.f32.xlu0 %v1718
    %v1720 = vpop.xlane.xlu0 %1719
    %v1721 = vsel %vm1049, %v1701, 0.0
    %1722 = vadd.xlane.f32.xlu0 %v1721
    %v1723 = vpop.xlane.xlu0 %1722
    %v1724 = vsel %vm1049, %v1703, 0.0
    %1725 = vadd.xlane.f32.xlu0 %v1724
    %v1726 = vpop.xlane.xlu0 %1725
    %v1727 = vsel %vm1049, %v1705, 0.0
    %1728 = vadd.xlane.f32.xlu0 %v1727
    %v1729 = vpop.xlane.xlu0 %1728
    %v1730 = vrcp.pop %v1708
    %v1731 = vrcp.pop %v1711
    %v1732 = vrcp.pop %v1714
    %v1733 = vrcp.pop %v1717
    %v1734 = vrcp.pop %v1720
    %v1735 = vrcp.pop %v1723
    %v1736 = vrcp.pop %v1726
    %v1737 = vrcp.pop %v1729
    %v1738 = vmul.f32 %v1691, %v1730
    %v1739 = vmul.f32 %v1693, %v1731
    %v1740 = vmul.f32 %v1695, %v1732
    %v1741 = vmul.f32 %v1697, %v1733
    %v1742 = vmul.f32 %v1699, %v1734
    %v1743 = vmul.f32 %v1701, %v1735
    %v1744 = vmul.f32 %v1703, %v1736
    %v1745 = vmul.f32 %v1705, %v1737
    %v1747 = vsel %vm1049, %v1738, 0
    %1749 = vmatprep.subr.mxu0 0.0
    %1750 = vmatpush1.msra.mxu0 %v969
    %1751 = vmatprep.subr.mxu0 0.0
    %1752 = vmatpush1.msra.mxu0 0.0
    %1753 = vmatprep.subr.mxu0 0.0
    %1754 = vmatpush1.msra.mxu0 0.0
    %1755 = vmatprep.subr.mxu0 0.0
    %1756 = vmatpush1.msra.mxu0 0.0
    %1757 = vmatprep.subr.mxu0 0.0
    %1758 = vmatpush1.msra.mxu0 0.0
    %1759 = vmatprep.subr.mxu0 0.0
    %1760 = vmatpush1.msra.mxu0 0.0
    %1761 = vmatprep.subr.mxu0 0.0
    %1762 = vmatpush1.msra.mxu0 0.0
    %1763 = vmatprep.subr.mxu0 0.0
    %1764 = vmatpush1.msra.mxu0 0.0
    %1765 = vmatprep.subr.mxu0 0.0
    %1766 = vmatpush1.msra.mxu0 0.0
    %1767 = vmatprep.subr.mxu0 0.0
    %1768 = vmatpush1.msra.mxu0 0.0
    %1769 = vmatprep.subr.mxu0 0.0
    %1770 = vmatpush1.msra.mxu0 0.0
    %1771 = vmatprep.subr.mxu0 0.0
    %1772 = vmatpush1.msra.mxu0 0.0
    %1773 = vmatprep.subr.mxu0 0.0
    %1774 = vmatpush1.msra.mxu0 0.0
    %1775 = vmatprep.subr.mxu0 0.0
    %1776 = vmatpush1.msra.mxu0 0.0
    %1777 = vmatprep.subr.mxu0 0.0
    %1778 = vmatpush1.msra.mxu0 0.0
    %1779 = vmatprep.subr.mxu0 0.0
    %1780 = vmatpush1.msra.mxu0 0.0
    %1781 = vmatprep.subr.mxu0 0.0
    %1782 = vmatpush1.msra.mxu0 0.0
    %1783 = vmatprep.subr.mxu0 0.0
    %1784 = vmatpush1.msra.mxu0 0.0
    %1785 = vmatprep.subr.mxu0 0.0
    %1786 = vmatpush1.msra.mxu0 0.0
    %1787 = vmatprep.subr.mxu0 0.0
    %1788 = vmatpush1.msra.mxu0 0.0
    %1789 = vmatprep.subr.mxu0 0.0
    %1790 = vmatpush1.msra.mxu0 0.0
    %1791 = vmatprep.subr.mxu0 0.0
    %1792 = vmatpush1.msra.mxu0 0.0
    %1793 = vmatprep.subr.mxu0 0.0
    %1794 = vmatpush1.msra.mxu0 0.0
    %1795 = vmatprep.subr.mxu0 0.0
    %1796 = vmatpush1.msra.mxu0 0.0
    %1797 = vmatprep.subr.mxu0 0.0
    %1798 = vmatpush1.msra.mxu0 0.0
    %1799 = vmatprep.subr.mxu0 0.0
    %1800 = vmatpush1.msra.mxu0 0.0
    %1801 = vmatprep.subr.mxu0 0.0
    %1802 = vmatpush1.msra.mxu0 0.0
    %1803 = vmatprep.subr.mxu0 0.0
    %1804 = vmatpush1.msra.mxu0 0.0
    %1805 = vmatprep.subr.mxu0 0.0
    %1806 = vmatpush1.msra.mxu0 0.0
    %1807 = vmatprep.subr.mxu0 0.0
    %1808 = vmatpush1.msra.mxu0 0.0
    %1809 = vmatprep.subr.mxu0 0.0
    %1810 = vmatpush1.msra.mxu0 0.0
    %1811 = vmatprep.subr.mxu0 0.0
    %1812 = vmatpush1.msra.mxu0 0.0
    %1813 = vmatprep.mubr.f32.mxu0 0.0
    %1814 = vmatmul.mubr.f32.gmra.mrb[0].mxu0 %v1747
    %v1815 = vpop.f32.mrb[0].mxu0
    %v1816 = vadd.f32 0.0, %v1815
    %v1817 = vpop.f32.mrb[0].mxu0
    %1818 = vdwg.mxu0
    %v1820 = vsel %vm1049, %v1739, 0
    %1822 = vmatprep.subr.mxu0 0.0
    %1823 = vmatpush1.msra.mxu0 %v1037
    %1824 = vmatprep.subr.mxu0 0.0
    %1825 = vmatpush1.msra.mxu0 0.0
    %1826 = vmatprep.subr.mxu0 0.0
    %1827 = vmatpush1.msra.mxu0 0.0
    %1828 = vmatprep.subr.mxu0 0.0
    %1829 = vmatpush1.msra.mxu0 0.0
    %1830 = vmatprep.subr.mxu0 0.0
    %1831 = vmatpush1.msra.mxu0 0.0
    %1832 = vmatprep.subr.mxu0 0.0
    %1833 = vmatpush1.msra.mxu0 0.0
    %1834 = vmatprep.subr.mxu0 0.0
    %1835 = vmatpush1.msra.mxu0 0.0
    %1836 = vmatprep.subr.mxu0 0.0
    %1837 = vmatpush1.msra.mxu0 0.0
    %1838 = vmatprep.subr.mxu0 0.0
    %1839 = vmatpush1.msra.mxu0 0.0
    %1840 = vmatprep.subr.mxu0 0.0
    %1841 = vmatpush1.msra.mxu0 0.0
    %1842 = vmatprep.subr.mxu0 0.0
    %1843 = vmatpush1.msra.mxu0 0.0
    %1844 = vmatprep.subr.mxu0 0.0
    %1845 = vmatpush1.msra.mxu0 0.0
    %1846 = vmatprep.subr.mxu0 0.0
    %1847 = vmatpush1.msra.mxu0 0.0
    %1848 = vmatprep.subr.mxu0 0.0
    %1849 = vmatpush1.msra.mxu0 0.0
    %1850 = vmatprep.subr.mxu0 0.0
    %1851 = vmatpush1.msra.mxu0 0.0
    %1852 = vmatprep.subr.mxu0 0.0
    %1853 = vmatpush1.msra.mxu0 0.0
    %1854 = vmatprep.subr.mxu0 0.0
    %1855 = vmatpush1.msra.mxu0 0.0
    %1856 = vmatprep.subr.mxu0 0.0
    %1857 = vmatpush1.msra.mxu0 0.0
    %1858 = vmatprep.subr.mxu0 0.0
    %1859 = vmatpush1.msra.mxu0 0.0
    %1860 = vmatprep.subr.mxu0 0.0
    %1861 = vmatpush1.msra.mxu0 0.0
    %1862 = vmatprep.subr.mxu0 0.0
    %1863 = vmatpush1.msra.mxu0 0.0
    %1864 = vmatprep.subr.mxu0 0.0
    %1865 = vmatpush1.msra.mxu0 0.0
    %1866 = vmatprep.subr.mxu0 0.0
    %1867 = vmatpush1.msra.mxu0 0.0
    %1868 = vmatprep.subr.mxu0 0.0
    %1869 = vmatpush1.msra.mxu0 0.0
    %1870 = vmatprep.subr.mxu0 0.0
    %1871 = vmatpush1.msra.mxu0 0.0
    %1872 = vmatprep.subr.mxu0 0.0
    %1873 = vmatpush1.msra.mxu0 0.0
    %1874 = vmatprep.subr.mxu0 0.0
    %1875 = vmatpush1.msra.mxu0 0.0
    %1876 = vmatprep.subr.mxu0 0.0
    %1877 = vmatpush1.msra.mxu0 0.0
    %1878 = vmatprep.subr.mxu0 0.0
    %1879 = vmatpush1.msra.mxu0 0.0
    %1880 = vmatprep.subr.mxu0 0.0
    %1881 = vmatpush1.msra.mxu0 0.0
    %1882 = vmatprep.subr.mxu0 0.0
    %1883 = vmatpush1.msra.mxu0 0.0
    %1884 = vmatprep.subr.mxu0 0.0
    %1885 = vmatpush1.msra.mxu0 0.0
    %1886 = vmatprep.mubr.f32.mxu0 0.0
    %1887 = vmatmul.mubr.f32.gmra.mrb[0].mxu0 %v1820
    %v1888 = vpop.f32.mrb[0].mxu0
    %v1889 = vadd.f32 0.0, %v1888
    %v1890 = vpop.f32.mrb[0].mxu0
    %1891 = vdwg.mxu0
    %v1893 = vsel %vm1049, %v1740, 0
    %1895 = vmatprep.subr.mxu0 0.0
    %1896 = vmatpush1.msra.mxu0 %v970
    %1897 = vmatprep.subr.mxu0 0.0
    %1898 = vmatpush1.msra.mxu0 0.0
    %1899 = vmatprep.subr.mxu0 0.0
    %1900 = vmatpush1.msra.mxu0 0.0
    %1901 = vmatprep.subr.mxu0 0.0
    %1902 = vmatpush1.msra.mxu0 0.0
    %1903 = vmatprep.subr.mxu0 0.0
    %1904 = vmatpush1.msra.mxu0 0.0
    %1905 = vmatprep.subr.mxu0 0.0
    %1906 = vmatpush1.msra.mxu0 0.0
    %1907 = vmatprep.subr.mxu0 0.0
    %1908 = vmatpush1.msra.mxu0 0.0
    %1909 = vmatprep.subr.mxu0 0.0
    %1910 = vmatpush1.msra.mxu0 0.0
    %1911 = vmatprep.subr.mxu0 0.0
    %1912 = vmatpush1.msra.mxu0 0.0
    %1913 = vmatprep.subr.mxu0 0.0
    %1914 = vmatpush1.msra.mxu0 0.0
    %1915 = vmatprep.subr.mxu0 0.0
    %1916 = vmatpush1.msra.mxu0 0.0
    %1917 = vmatprep.subr.mxu0 0.0
    %1918 = vmatpush1.msra.mxu0 0.0
    %1919 = vmatprep.subr.mxu0 0.0
    %1920 = vmatpush1.msra.mxu0 0.0
    %1921 = vmatprep.subr.mxu0 0.0
    %1922 = vmatpush1.msra.mxu0 0.0
    %1923 = vmatprep.subr.mxu0 0.0
    %1924 = vmatpush1.msra.mxu0 0.0
    %1925 = vmatprep.subr.mxu0 0.0
    %1926 = vmatpush1.msra.mxu0 0.0
    %1927 = vmatprep.subr.mxu0 0.0
    %1928 = vmatpush1.msra.mxu0 0.0
    %1929 = vmatprep.subr.mxu0 0.0
    %1930 = vmatpush1.msra.mxu0 0.0
    %1931 = vmatprep.subr.mxu0 0.0
    %1932 = vmatpush1.msra.mxu0 0.0
    %1933 = vmatprep.subr.mxu0 0.0
    %1934 = vmatpush1.msra.mxu0 0.0
    %1935 = vmatprep.subr.mxu0 0.0
    %1936 = vmatpush1.msra.mxu0 0.0
    %1937 = vmatprep.subr.mxu0 0.0
    %1938 = vmatpush1.msra.mxu0 0.0
    %1939 = vmatprep.subr.mxu0 0.0
    %1940 = vmatpush1.msra.mxu0 0.0
    %1941 = vmatprep.subr.mxu0 0.0
    %1942 = vmatpush1.msra.mxu0 0.0
    %1943 = vmatprep.subr.mxu0 0.0
    %1944 = vmatpush1.msra.mxu0 0.0
    %1945 = vmatprep.subr.mxu0 0.0
    %1946 = vmatpush1.msra.mxu0 0.0
    %1947 = vmatprep.subr.mxu0 0.0
    %1948 = vmatpush1.msra.mxu0 0.0
    %1949 = vmatprep.subr.mxu0 0.0
    %1950 = vmatpush1.msra.mxu0 0.0
    %1951 = vmatprep.subr.mxu0 0.0
    %1952 = vmatpush1.msra.mxu0 0.0
    %1953 = vmatprep.subr.mxu0 0.0
    %1954 = vmatpush1.msra.mxu0 0.0
    %1955 = vmatprep.subr.mxu0 0.0
    %1956 = vmatpush1.msra.mxu0 0.0
    %1957 = vmatprep.subr.mxu0 0.0
    %1958 = vmatpush1.msra.mxu0 0.0
    %1959 = vmatprep.mubr.f32.mxu0 0.0
    %1960 = vmatmul.mubr.f32.gmra.mrb[0].mxu0 %v1893
    %v1961 = vpop.f32.mrb[0].mxu0
    %v1962 = vadd.f32 0.0, %v1961
    %v1963 = vpop.f32.mrb[0].mxu0
    %1964 = vdwg.mxu0
    %v1966 = vsel %vm1049, %v1741, 0
    %1968 = vmatprep.subr.mxu0 0.0
    %1969 = vmatpush1.msra.mxu0 %v1038
    %1970 = vmatprep.subr.mxu0 0.0
    %1971 = vmatpush1.msra.mxu0 0.0
    %1972 = vmatprep.subr.mxu0 0.0
    %1973 = vmatpush1.msra.mxu0 0.0
    %1974 = vmatprep.subr.mxu0 0.0
    %1975 = vmatpush1.msra.mxu0 0.0
    %1976 = vmatprep.subr.mxu0 0.0
    %1977 = vmatpush1.msra.mxu0 0.0
    %1978 = vmatprep.subr.mxu0 0.0
    %1979 = vmatpush1.msra.mxu0 0.0
    %1980 = vmatprep.subr.mxu0 0.0
    %1981 = vmatpush1.msra.mxu0 0.0
    %1982 = vmatprep.subr.mxu0 0.0
    %1983 = vmatpush1.msra.mxu0 0.0
    %1984 = vmatprep.subr.mxu0 0.0
    %1985 = vmatpush1.msra.mxu0 0.0
    %1986 = vmatprep.subr.mxu0 0.0
    %1987 = vmatpush1.msra.mxu0 0.0
    %1988 = vmatprep.subr.mxu0 0.0
    %1989 = vmatpush1.msra.mxu0 0.0
    %1990 = vmatprep.subr.mxu0 0.0
    %1991 = vmatpush1.msra.mxu0 0.0
    %1992 = vmatprep.subr.mxu0 0.0
    %1993 = vmatpush1.msra.mxu0 0.0
    %1994 = vmatprep.subr.mxu0 0.0
    %1995 = vmatpush1.msra.mxu0 0.0
    %1996 = vmatprep.subr.mxu0 0.0
    %1997 = vmatpush1.msra.mxu0 0.0
    %1998 = vmatprep.subr.mxu0 0.0
    %1999 = vmatpush1.msra.mxu0 0.0
    %2000 = vmatprep.subr.mxu0 0.0
    %2001 = vmatpush1.msra.mxu0 0.0
    %2002 = vmatprep.subr.mxu0 0.0
    %2003 = vmatpush1.msra.mxu0 0.0
    %2004 = vmatprep.subr.mxu0 0.0
    %2005 = vmatpush1.msra.mxu0 0.0
    %2006 = vmatprep.subr.mxu0 0.0
    %2007 = vmatpush1.msra.mxu0 0.0
    %2008 = vmatprep.subr.mxu0 0.0
    %2009 = vmatpush1.msra.mxu0 0.0
    %2010 = vmatprep.subr.mxu0 0.0
    %2011 = vmatpush1.msra.mxu0 0.0
    %2012 = vmatprep.subr.mxu0 0.0
    %2013 = vmatpush1.msra.mxu0 0.0
    %2014 = vmatprep.subr.mxu0 0.0
    %2015 = vmatpush1.msra.mxu0 0.0
    %2016 = vmatprep.subr.mxu0 0.0
    %2017 = vmatpush1.msra.mxu0 0.0
    %2018 = vmatprep.subr.mxu0 0.0
    %2019 = vmatpush1.msra.mxu0 0.0
    %2020 = vmatprep.subr.mxu0 0.0
    %2021 = vmatpush1.msra.mxu0 0.0
    %2022 = vmatprep.subr.mxu0 0.0
    %2023 = vmatpush1.msra.mxu0 0.0
    %2024 = vmatprep.subr.mxu0 0.0
    %2025 = vmatpush1.msra.mxu0 0.0
    %2026 = vmatprep.subr.mxu0 0.0
    %2027 = vmatpush1.msra.mxu0 0.0
    %2028 = vmatprep.subr.mxu0 0.0
    %2029 = vmatpush1.msra.mxu0 0.0
    %2030 = vmatprep.subr.mxu0 0.0
    %2031 = vmatpush1.msra.mxu0 0.0
    %2032 = vmatprep.mubr.f32.mxu0 0.0
    %2033 = vmatmul.mubr.f32.gmra.mrb[0].mxu0 %v1966
    %v2034 = vpop.f32.mrb[0].mxu0
    %v2035 = vadd.f32 0.0, %v2034
    %v2036 = vpop.f32.mrb[0].mxu0
    %2037 = vdwg.mxu0
    %v2039 = vsel %vm1049, %v1742, 0
    %2041 = vmatprep.subr.mxu0 0.0
    %2042 = vmatpush1.msra.mxu0 %v971
    %2043 = vmatprep.subr.mxu0 0.0
    %2044 = vmatpush1.msra.mxu0 0.0
    %2045 = vmatprep.subr.mxu0 0.0
    %2046 = vmatpush1.msra.mxu0 0.0
    %2047 = vmatprep.subr.mxu0 0.0
    %2048 = vmatpush1.msra.mxu0 0.0
    %2049 = vmatprep.subr.mxu0 0.0
    %2050 = vmatpush1.msra.mxu0 0.0
    %2051 = vmatprep.subr.mxu0 0.0
    %2052 = vmatpush1.msra.mxu0 0.0
    %2053 = vmatprep.subr.mxu0 0.0
    %2054 = vmatpush1.msra.mxu0 0.0
    %2055 = vmatprep.subr.mxu0 0.0
    %2056 = vmatpush1.msra.mxu0 0.0
    %2057 = vmatprep.subr.mxu0 0.0
    %2058 = vmatpush1.msra.mxu0 0.0
    %2059 = vmatprep.subr.mxu0 0.0
    %2060 = vmatpush1.msra.mxu0 0.0
    %2061 = vmatprep.subr.mxu0 0.0
    %2062 = vmatpush1.msra.mxu0 0.0
    %2063 = vmatprep.subr.mxu0 0.0
    %2064 = vmatpush1.msra.mxu0 0.0
    %2065 = vmatprep.subr.mxu0 0.0
    %2066 = vmatpush1.msra.mxu0 0.0
    %2067 = vmatprep.subr.mxu0 0.0
    %2068 = vmatpush1.msra.mxu0 0.0
    %2069 = vmatprep.subr.mxu0 0.0
    %2070 = vmatpush1.msra.mxu0 0.0
    %2071 = vmatprep.subr.mxu0 0.0
    %2072 = vmatpush1.msra.mxu0 0.0
    %2073 = vmatprep.subr.mxu0 0.0
    %2074 = vmatpush1.msra.mxu0 0.0
    %2075 = vmatprep.subr.mxu0 0.0
    %2076 = vmatpush1.msra.mxu0 0.0
    %2077 = vmatprep.subr.mxu0 0.0
    %2078 = vmatpush1.msra.mxu0 0.0
    %2079 = vmatprep.subr.mxu0 0.0
    %2080 = vmatpush1.msra.mxu0 0.0
    %2081 = vmatprep.subr.mxu0 0.0
    %2082 = vmatpush1.msra.mxu0 0.0
    %2083 = vmatprep.subr.mxu0 0.0
    %2084 = vmatpush1.msra.mxu0 0.0
    %2085 = vmatprep.subr.mxu0 0.0
    %2086 = vmatpush1.msra.mxu0 0.0
    %2087 = vmatprep.subr.mxu0 0.0
    %2088 = vmatpush1.msra.mxu0 0.0
    %2089 = vmatprep.subr.mxu0 0.0
    %2090 = vmatpush1.msra.mxu0 0.0
    %2091 = vmatprep.subr.mxu0 0.0
    %2092 = vmatpush1.msra.mxu0 0.0
    %2093 = vmatprep.subr.mxu0 0.0
    %2094 = vmatpush1.msra.mxu0 0.0
    %2095 = vmatprep.subr.mxu0 0.0
    %2096 = vmatpush1.msra.mxu0 0.0
    %2097 = vmatprep.subr.mxu0 0.0
    %2098 = vmatpush1.msra.mxu0 0.0
    %2099 = vmatprep.subr.mxu0 0.0
    %2100 = vmatpush1.msra.mxu0 0.0
    %2101 = vmatprep.subr.mxu0 0.0
    %2102 = vmatpush1.msra.mxu0 0.0
    %2103 = vmatprep.subr.mxu0 0.0
    %2104 = vmatpush1.msra.mxu0 0.0
    %2105 = vmatprep.mubr.f32.mxu0 0.0
    %2106 = vmatmul.mubr.f32.gmra.mrb[0].mxu0 %v2039
    %v2107 = vpop.f32.mrb[0].mxu0
    %v2108 = vadd.f32 0.0, %v2107
    %v2109 = vpop.f32.mrb[0].mxu0
    %2110 = vdwg.mxu0
    %v2112 = vsel %vm1049, %v1743, 0
    %2114 = vmatprep.subr.mxu0 0.0
    %2115 = vmatpush1.msra.mxu0 %v1039
    %2116 = vmatprep.subr.mxu0 0.0
    %2117 = vmatpush1.msra.mxu0 0.0
    %2118 = vmatprep.subr.mxu0 0.0
    %2119 = vmatpush1.msra.mxu0 0.0
    %2120 = vmatprep.subr.mxu0 0.0
    %2121 = vmatpush1.msra.mxu0 0.0
    %2122 = vmatprep.subr.mxu0 0.0
    %2123 = vmatpush1.msra.mxu0 0.0
    %2124 = vmatprep.subr.mxu0 0.0
    %2125 = vmatpush1.msra.mxu0 0.0
    %2126 = vmatprep.subr.mxu0 0.0
    %2127 = vmatpush1.msra.mxu0 0.0
    %2128 = vmatprep.subr.mxu0 0.0
    %2129 = vmatpush1.msra.mxu0 0.0
    %2130 = vmatprep.subr.mxu0 0.0
    %2131 = vmatpush1.msra.mxu0 0.0
    %2132 = vmatprep.subr.mxu0 0.0
    %2133 = vmatpush1.msra.mxu0 0.0
    %2134 = vmatprep.subr.mxu0 0.0
    %2135 = vmatpush1.msra.mxu0 0.0
    %2136 = vmatprep.subr.mxu0 0.0
    %2137 = vmatpush1.msra.mxu0 0.0
    %2138 = vmatprep.subr.mxu0 0.0
    %2139 = vmatpush1.msra.mxu0 0.0
    %2140 = vmatprep.subr.mxu0 0.0
    %2141 = vmatpush1.msra.mxu0 0.0
    %2142 = vmatprep.subr.mxu0 0.0
    %2143 = vmatpush1.msra.mxu0 0.0
    %2144 = vmatprep.subr.mxu0 0.0
    %2145 = vmatpush1.msra.mxu0 0.0
    %2146 = vmatprep.subr.mxu0 0.0
    %2147 = vmatpush1.msra.mxu0 0.0
    %2148 = vmatprep.subr.mxu0 0.0
    %2149 = vmatpush1.msra.mxu0 0.0
    %2150 = vmatprep.subr.mxu0 0.0
    %2151 = vmatpush1.msra.mxu0 0.0
    %2152 = vmatprep.subr.mxu0 0.0
    %2153 = vmatpush1.msra.mxu0 0.0
    %2154 = vmatprep.subr.mxu0 0.0
    %2155 = vmatpush1.msra.mxu0 0.0
    %2156 = vmatprep.subr.mxu0 0.0
    %2157 = vmatpush1.msra.mxu0 0.0
    %2158 = vmatprep.subr.mxu0 0.0
    %2159 = vmatpush1.msra.mxu0 0.0
    %2160 = vmatprep.subr.mxu0 0.0
    %2161 = vmatpush1.msra.mxu0 0.0
    %2162 = vmatprep.subr.mxu0 0.0
    %2163 = vmatpush1.msra.mxu0 0.0
    %2164 = vmatprep.subr.mxu0 0.0
    %2165 = vmatpush1.msra.mxu0 0.0
    %2166 = vmatprep.subr.mxu0 0.0
    %2167 = vmatpush1.msra.mxu0 0.0
    %2168 = vmatprep.subr.mxu0 0.0
    %2169 = vmatpush1.msra.mxu0 0.0
    %2170 = vmatprep.subr.mxu0 0.0
    %2171 = vmatpush1.msra.mxu0 0.0
    %2172 = vmatprep.subr.mxu0 0.0
    %2173 = vmatpush1.msra.mxu0 0.0
    %2174 = vmatprep.subr.mxu0 0.0
    %2175 = vmatpush1.msra.mxu0 0.0
    %2176 = vmatprep.subr.mxu0 0.0
    %2177 = vmatpush1.msra.mxu0 0.0
    %2178 = vmatprep.mubr.f32.mxu0 0.0
    %2179 = vmatmul.mubr.f32.gmra.mrb[0].mxu0 %v2112
    %v2180 = vpop.f32.mrb[0].mxu0
    %v2181 = vadd.f32 0.0, %v2180
    %v2182 = vpop.f32.mrb[0].mxu0
    %2183 = vdwg.mxu0
    %v2185 = vsel %vm1049, %v1744, 0
    %2187 = vmatprep.subr.mxu0 0.0
    %2188 = vmatpush1.msra.mxu0 %v972
    %2189 = vmatprep.subr.mxu0 0.0
    %2190 = vmatpush1.msra.mxu0 0.0
    %2191 = vmatprep.subr.mxu0 0.0
    %2192 = vmatpush1.msra.mxu0 0.0
    %2193 = vmatprep.subr.mxu0 0.0
    %2194 = vmatpush1.msra.mxu0 0.0
    %2195 = vmatprep.subr.mxu0 0.0
    %2196 = vmatpush1.msra.mxu0 0.0
    %2197 = vmatprep.subr.mxu0 0.0
    %2198 = vmatpush1.msra.mxu0 0.0
    %2199 = vmatprep.subr.mxu0 0.0
    %2200 = vmatpush1.msra.mxu0 0.0
    %2201 = vmatprep.subr.mxu0 0.0
    %2202 = vmatpush1.msra.mxu0 0.0
    %2203 = vmatprep.subr.mxu0 0.0
    %2204 = vmatpush1.msra.mxu0 0.0
    %2205 = vmatprep.subr.mxu0 0.0
    %2206 = vmatpush1.msra.mxu0 0.0
    %2207 = vmatprep.subr.mxu0 0.0
    %2208 = vmatpush1.msra.mxu0 0.0
    %2209 = vmatprep.subr.mxu0 0.0
    %2210 = vmatpush1.msra.mxu0 0.0
    %2211 = vmatprep.subr.mxu0 0.0
    %2212 = vmatpush1.msra.mxu0 0.0
    %2213 = vmatprep.subr.mxu0 0.0
    %2214 = vmatpush1.msra.mxu0 0.0
    %2215 = vmatprep.subr.mxu0 0.0
    %2216 = vmatpush1.msra.mxu0 0.0
    %2217 = vmatprep.subr.mxu0 0.0
    %2218 = vmatpush1.msra.mxu0 0.0
    %2219 = vmatprep.subr.mxu0 0.0
    %2220 = vmatpush1.msra.mxu0 0.0
    %2221 = vmatprep.subr.mxu0 0.0
    %2222 = vmatpush1.msra.mxu0 0.0
    %2223 = vmatprep.subr.mxu0 0.0
    %2224 = vmatpush1.msra.mxu0 0.0
    %2225 = vmatprep.subr.mxu0 0.0
    %2226 = vmatpush1.msra.mxu0 0.0
    %2227 = vmatprep.subr.mxu0 0.0
    %2228 = vmatpush1.msra.mxu0 0.0
    %2229 = vmatprep.subr.mxu0 0.0
    %2230 = vmatpush1.msra.mxu0 0.0
    %2231 = vmatprep.subr.mxu0 0.0
    %2232 = vmatpush1.msra.mxu0 0.0
    %2233 = vmatprep.subr.mxu0 0.0
    %2234 = vmatpush1.msra.mxu0 0.0
    %2235 = vmatprep.subr.mxu0 0.0
    %2236 = vmatpush1.msra.mxu0 0.0
    %2237 = vmatprep.subr.mxu0 0.0
    %2238 = vmatpush1.msra.mxu0 0.0
    %2239 = vmatprep.subr.mxu0 0.0
    %2240 = vmatpush1.msra.mxu0 0.0
    %2241 = vmatprep.subr.mxu0 0.0
    %2242 = vmatpush1.msra.mxu0 0.0
    %2243 = vmatprep.subr.mxu0 0.0
    %2244 = vmatpush1.msra.mxu0 0.0
    %2245 = vmatprep.subr.mxu0 0.0
    %2246 = vmatpush1.msra.mxu0 0.0
    %2247 = vmatprep.subr.mxu0 0.0
    %2248 = vmatpush1.msra.mxu0 0.0
    %2249 = vmatprep.subr.mxu0 0.0
    %2250 = vmatpush1.msra.mxu0 0.0
    %2251 = vmatprep.mubr.f32.mxu0 0.0
    %2252 = vmatmul.mubr.f32.gmra.mrb[0].mxu0 %v2185
    %v2253 = vpop.f32.mrb[0].mxu0
    %v2254 = vadd.f32 0.0, %v2253
    %v2255 = vpop.f32.mrb[0].mxu0
    %2256 = vdwg.mxu0
    %v2258 = vsel %vm1049, %v1745, 0
    %2260 = vmatprep.subr.mxu0 0.0
    %2261 = vmatpush1.msra.mxu0 %v1040
    %2262 = vmatprep.subr.mxu0 0.0
    %2263 = vmatpush1.msra.mxu0 0.0
    %2264 = vmatprep.subr.mxu0 0.0
    %2265 = vmatpush1.msra.mxu0 0.0
    %2266 = vmatprep.subr.mxu0 0.0
    %2267 = vmatpush1.msra.mxu0 0.0
    %2268 = vmatprep.subr.mxu0 0.0
    %2269 = vmatpush1.msra.mxu0 0.0
    %2270 = vmatprep.subr.mxu0 0.0
    %2271 = vmatpush1.msra.mxu0 0.0
    %2272 = vmatprep.subr.mxu0 0.0
    %2273 = vmatpush1.msra.mxu0 0.0
    %2274 = vmatprep.subr.mxu0 0.0
    %2275 = vmatpush1.msra.mxu0 0.0
    %2276 = vmatprep.subr.mxu0 0.0
    %2277 = vmatpush1.msra.mxu0 0.0
    %2278 = vmatprep.subr.mxu0 0.0
    %2279 = vmatpush1.msra.mxu0 0.0
    %2280 = vmatprep.subr.mxu0 0.0
    %2281 = vmatpush1.msra.mxu0 0.0
    %2282 = vmatprep.subr.mxu0 0.0
    %2283 = vmatpush1.msra.mxu0 0.0
    %2284 = vmatprep.subr.mxu0 0.0
    %2285 = vmatpush1.msra.mxu0 0.0
    %2286 = vmatprep.subr.mxu0 0.0
    %2287 = vmatpush1.msra.mxu0 0.0
    %2288 = vmatprep.subr.mxu0 0.0
    %2289 = vmatpush1.msra.mxu0 0.0
    %2290 = vmatprep.subr.mxu0 0.0
    %2291 = vmatpush1.msra.mxu0 0.0
    %2292 = vmatprep.subr.mxu0 0.0
    %2293 = vmatpush1.msra.mxu0 0.0
    %2294 = vmatprep.subr.mxu0 0.0
    %2295 = vmatpush1.msra.mxu0 0.0
    %2296 = vmatprep.subr.mxu0 0.0
    %2297 = vmatpush1.msra.mxu0 0.0
    %2298 = vmatprep.subr.mxu0 0.0
    %2299 = vmatpush1.msra.mxu0 0.0
    %2300 = vmatprep.subr.mxu0 0.0
    %2301 = vmatpush1.msra.mxu0 0.0
    %2302 = vmatprep.subr.mxu0 0.0
    %2303 = vmatpush1.msra.mxu0 0.0
    %2304 = vmatprep.subr.mxu0 0.0
    %2305 = vmatpush1.msra.mxu0 0.0
    %2306 = vmatprep.subr.mxu0 0.0
    %2307 = vmatpush1.msra.mxu0 0.0
    %2308 = vmatprep.subr.mxu0 0.0
    %2309 = vmatpush1.msra.mxu0 0.0
    %2310 = vmatprep.subr.mxu0 0.0
    %2311 = vmatpush1.msra.mxu0 0.0
    %2312 = vmatprep.subr.mxu0 0.0
    %2313 = vmatpush1.msra.mxu0 0.0
    %2314 = vmatprep.subr.mxu0 0.0
    %2315 = vmatpush1.msra.mxu0 0.0
    %2316 = vmatprep.subr.mxu0 0.0
    %2317 = vmatpush1.msra.mxu0 0.0
    %2318 = vmatprep.subr.mxu0 0.0
    %2319 = vmatpush1.msra.mxu0 0.0
    %2320 = vmatprep.subr.mxu0 0.0
    %2321 = vmatpush1.msra.mxu0 0.0
    %2322 = vmatprep.subr.mxu0 0.0
    %2323 = vmatpush1.msra.mxu0 0.0
    %2324 = vmatprep.mubr.f32.mxu0 0.0
    %2325 = vmatmul.mubr.f32.gmra.mrb[0].mxu0 %v2258
    %v2326 = vpop.f32.mrb[0].mxu0
    %v2327 = vadd.f32 0.0, %v2326
    %v2328 = vpop.f32.mrb[0].mxu0
    %2329 = vdwg.mxu0
    %v2330 = vcombine.low %v1816, %v2108
    %v2331 = vcombine.high %v1816, %v2108
    %v2333 = vunpack.c.l.s4 1983009808
    %v2334 = vunpack.c.0.s8 %v2333
    %v2335 = vlaneseq
    %v2336 = vshrl.u32 %v2335, 7
    %v2337 = vsub.s32 %v2334, %v2336
    %v2338 = vrot.slane %v2330, %v2337
    %v2340 = vunpack.c.l.s4 1983009808
    %v2341 = vunpack.c.0.s8 %v2340
    %v2342 = vlaneseq
    %v2343 = vshrl.u32 %v2342, 7
    %v2344 = vsub.s32 %v2341, %v2343
    %v2345 = vrot.slane %v2331, %v2344
    %v2346 = vcombine.low %v1962, %v2254
    %v2347 = vcombine.high %v1962, %v2254
    %v2349 = vunpack.c.l.s4 1983009808
    %v2350 = vunpack.c.0.s8 %v2349
    %v2351 = vlaneseq
    %v2352 = vshrl.u32 %v2351, 7
    %v2353 = vsub.s32 %v2350, %v2352
    %v2354 = vrot.slane %v2346, %v2353
    %v2356 = vunpack.c.l.s4 1983009808
    %v2357 = vunpack.c.0.s8 %v2356
    %v2358 = vlaneseq
    %v2359 = vshrl.u32 %v2358, 7
    %v2360 = vsub.s32 %v2357, %v2359
    %v2361 = vrot.slane %v2347, %v2360
    %v2362 = vcombine.low %v2338, %v2354
    %v2363 = vcombine.high %v2338, %v2354
    %v2365 = vunpack.c.l.s4 1934713408
    %v2366 = vunpack.c.0.s8 %v2365
    %v2367 = vlaneseq
    %v2368 = vshrl.u32 %v2367, 7
    %v2369 = vsub.s32 %v2366, %v2368
    %v2370 = vrot.slane %v2362, %v2369
    %v2372 = vunpack.c.l.s4 1934713408
    %v2373 = vunpack.c.0.s8 %v2372
    %v2374 = vlaneseq
    %v2375 = vshrl.u32 %v2374, 7
    %v2376 = vsub.s32 %v2373, %v2375
    %v2377 = vrot.slane %v2363, %v2376
    %v2378 = vcombine.low %v2345, %v2361
    %v2379 = vcombine.high %v2345, %v2361
    %v2381 = vunpack.c.l.s4 1934713408
    %v2382 = vunpack.c.0.s8 %v2381
    %v2383 = vlaneseq
    %v2384 = vshrl.u32 %v2383, 7
    %v2385 = vsub.s32 %v2382, %v2384
    %v2386 = vrot.slane %v2378, %v2385
    %v2388 = vunpack.c.l.s4 1934713408
    %v2389 = vunpack.c.0.s8 %v2388
    %v2390 = vlaneseq
    %v2391 = vshrl.u32 %v2390, 7
    %v2392 = vsub.s32 %v2389, %v2391
    %v2393 = vrot.slane %v2379, %v2392
    %v2394 = vcombine.high %v2370, 0.0
    %v2395 = vcombine.high %v2377, 0.0
    %v2396 = vcombine.high %v2386, 0.0
    %v2397 = vcombine.high %v2393, 0.0
    %v2398 = vcombine.low %v1889, %v2181
    %v2399 = vcombine.high %v1889, %v2181
    %v2401 = vunpack.c.l.s4 1983009808
    %v2402 = vunpack.c.0.s8 %v2401
    %v2403 = vlaneseq
    %v2404 = vshrl.u32 %v2403, 7
    %v2405 = vsub.s32 %v2402, %v2404
    %v2406 = vrot.slane %v2398, %v2405
    %v2408 = vunpack.c.l.s4 1983009808
    %v2409 = vunpack.c.0.s8 %v2408
    %v2410 = vlaneseq
    %v2411 = vshrl.u32 %v2410, 7
    %v2412 = vsub.s32 %v2409, %v2411
    %v2413 = vrot.slane %v2399, %v2412
    %v2414 = vcombine.low %v2035, %v2327
    %v2415 = vcombine.high %v2035, %v2327
    %v2417 = vunpack.c.l.s4 1983009808
    %v2418 = vunpack.c.0.s8 %v2417
    %v2419 = vlaneseq
    %v2420 = vshrl.u32 %v2419, 7
    %v2421 = vsub.s32 %v2418, %v2420
    %v2422 = vrot.slane %v2414, %v2421
    %v2424 = vunpack.c.l.s4 1983009808
    %v2425 = vunpack.c.0.s8 %v2424
    %v2426 = vlaneseq
    %v2427 = vshrl.u32 %v2426, 7
    %v2428 = vsub.s32 %v2425, %v2427
    %v2429 = vrot.slane %v2415, %v2428
    %v2430 = vcombine.low %v2406, %v2422
    %v2431 = vcombine.high %v2406, %v2422
    %v2433 = vunpack.c.l.s4 1934713408
    %v2434 = vunpack.c.0.s8 %v2433
    %v2435 = vlaneseq
    %v2436 = vshrl.u32 %v2435, 7
    %v2437 = vsub.s32 %v2434, %v2436
    %v2438 = vrot.slane %v2430, %v2437
    %v2440 = vunpack.c.l.s4 1934713408
    %v2441 = vunpack.c.0.s8 %v2440
    %v2442 = vlaneseq
    %v2443 = vshrl.u32 %v2442, 7
    %v2444 = vsub.s32 %v2441, %v2443
    %v2445 = vrot.slane %v2431, %v2444
    %v2446 = vcombine.low %v2413, %v2429
    %v2447 = vcombine.high %v2413, %v2429
    %v2449 = vunpack.c.l.s4 1934713408
    %v2450 = vunpack.c.0.s8 %v2449
    %v2451 = vlaneseq
    %v2452 = vshrl.u32 %v2451, 7
    %v2453 = vsub.s32 %v2450, %v2452
    %v2454 = vrot.slane %v2446, %v2453
    %v2456 = vunpack.c.l.s4 1934713408
    %v2457 = vunpack.c.0.s8 %v2456
    %v2458 = vlaneseq
    %v2459 = vshrl.u32 %v2458, 7
    %v2460 = vsub.s32 %v2457, %v2459
    %v2461 = vrot.slane %v2447, %v2460
    %v2462 = vcombine.high %v2438, 0.0
    %v2463 = vcombine.high %v2445, 0.0
    %v2464 = vcombine.high %v2454, 0.0
    %v2465 = vcombine.high %v2461, 0.0
    %v2466 = vcombine.low %v2370, %v2377
    %v2468 = vunpack.c.l.s4 1983009808
    %v2469 = vunpack.c.0.s8 %v2468
    %v2470 = vlaneseq
    %v2471 = vshrl.u32 %v2470, 7
    %v2472 = vsub.s32 %v2469, %v2471
    %v2473 = vrot.slane %v2466, %v2472
    %v2474 = vcombine.low %v2394, %v2395
    %v2476 = vunpack.c.l.s4 1983009808
    %v2477 = vunpack.c.0.s8 %v2476
    %v2478 = vlaneseq
    %v2479 = vshrl.u32 %v2478, 7
    %v2480 = vsub.s32 %v2477, %v2479
    %v2481 = vrot.slane %v2474, %v2480
    %v2482 = vcombine.low %v2386, %v2393
    %v2484 = vunpack.c.l.s4 1983009808
    %v2485 = vunpack.c.0.s8 %v2484
    %v2486 = vlaneseq
    %v2487 = vshrl.u32 %v2486, 7
    %v2488 = vsub.s32 %v2485, %v2487
    %v2489 = vrot.slane %v2482, %v2488
    %v2490 = vcombine.low %v2396, %v2397
    %v2492 = vunpack.c.l.s4 1983009808
    %v2493 = vunpack.c.0.s8 %v2492
    %v2494 = vlaneseq
    %v2495 = vshrl.u32 %v2494, 7
    %v2496 = vsub.s32 %v2493, %v2495
    %v2497 = vrot.slane %v2490, %v2496
    %v2498 = vcombine.low %v2473, %v2481
    %v2499 = vcombine.high %v2473, %v2481
    %v2501 = vunpack.c.l.s4 1934713408
    %v2502 = vunpack.c.0.s8 %v2501
    %v2503 = vlaneseq
    %v2504 = vshrl.u32 %v2503, 7
    %v2505 = vsub.s32 %v2502, %v2504
    %v2506 = vrot.slane %v2498, %v2505
    %v2508 = vunpack.c.l.s4 1934713408
    %v2509 = vunpack.c.0.s8 %v2508
    %v2510 = vlaneseq
    %v2511 = vshrl.u32 %v2510, 7
    %v2512 = vsub.s32 %v2509, %v2511
    %v2513 = vrot.slane %v2499, %v2512
    %v2514 = vcombine.low %v2489, %v2497
    %v2515 = vcombine.high %v2489, %v2497
    %v2517 = vunpack.c.l.s4 1934713408
    %v2518 = vunpack.c.0.s8 %v2517
    %v2519 = vlaneseq
    %v2520 = vshrl.u32 %v2519, 7
    %v2521 = vsub.s32 %v2518, %v2520
    %v2522 = vrot.slane %v2514, %v2521
    %v2524 = vunpack.c.l.s4 1934713408
    %v2525 = vunpack.c.0.s8 %v2524
    %v2526 = vlaneseq
    %v2527 = vshrl.u32 %v2526, 7
    %v2528 = vsub.s32 %v2525, %v2527
    %v2529 = vrot.slane %v2515, %v2528
    %v2530 = vcombine.low %v2506, %v2522
    %v2531 = vcombine.high %v2506, %v2522
    %v2532 = vcombine.low %v2513, %v2529
    %v2533 = vcombine.high %v2513, %v2529
    %v2534 = vcombine.low %v2438, %v2445
    %v2536 = vunpack.c.l.s4 1983009808
    %v2537 = vunpack.c.0.s8 %v2536
    %v2538 = vlaneseq
    %v2539 = vshrl.u32 %v2538, 7
    %v2540 = vsub.s32 %v2537, %v2539
    %v2541 = vrot.slane %v2534, %v2540
    %v2542 = vcombine.low %v2462, %v2463
    %v2544 = vunpack.c.l.s4 1983009808
    %v2545 = vunpack.c.0.s8 %v2544
    %v2546 = vlaneseq
    %v2547 = vshrl.u32 %v2546, 7
    %v2548 = vsub.s32 %v2545, %v2547
    %v2549 = vrot.slane %v2542, %v2548
    %v2550 = vcombine.low %v2454, %v2461
    %v2552 = vunpack.c.l.s4 1983009808
    %v2553 = vunpack.c.0.s8 %v2552
    %v2554 = vlaneseq
    %v2555 = vshrl.u32 %v2554, 7
    %v2556 = vsub.s32 %v2553, %v2555
    %v2557 = vrot.slane %v2550, %v2556
    %v2558 = vcombine.low %v2464, %v2465
    %v2560 = vunpack.c.l.s4 1983009808
    %v2561 = vunpack.c.0.s8 %v2560
    %v2562 = vlaneseq
    %v2563 = vshrl.u32 %v2562, 7
    %v2564 = vsub.s32 %v2561, %v2563
    %v2565 = vrot.slane %v2558, %v2564
    %v2566 = vcombine.low %v2541, %v2549
    %v2567 = vcombine.high %v2541, %v2549
    %v2569 = vunpack.c.l.s4 1934713408
    %v2570 = vunpack.c.0.s8 %v2569
    %v2571 = vlaneseq
    %v2572 = vshrl.u32 %v2571, 7
    %v2573 = vsub.s32 %v2570, %v2572
    %v2574 = vrot.slane %v2566, %v2573
    %v2576 = vunpack.c.l.s4 1934713408
    %v2577 = vunpack.c.0.s8 %v2576
    %v2578 = vlaneseq
    %v2579 = vshrl.u32 %v2578, 7
    %v2580 = vsub.s32 %v2577, %v2579
    %v2581 = vrot.slane %v2567, %v2580
    %v2582 = vcombine.low %v2557, %v2565
    %v2583 = vcombine.high %v2557, %v2565
    %v2585 = vunpack.c.l.s4 1934713408
    %v2586 = vunpack.c.0.s8 %v2585
    %v2587 = vlaneseq
    %v2588 = vshrl.u32 %v2587, 7
    %v2589 = vsub.s32 %v2586, %v2588
    %v2590 = vrot.slane %v2582, %v2589
    %v2592 = vunpack.c.l.s4 1934713408
    %v2593 = vunpack.c.0.s8 %v2592
    %v2594 = vlaneseq
    %v2595 = vshrl.u32 %v2594, 7
    %v2596 = vsub.s32 %v2593, %v2595
    %v2597 = vrot.slane %v2583, %v2596
    %v2598 = vcombine.low %v2574, %v2590
    %v2599 = vcombine.high %v2574, %v2590
    %v2600 = vcombine.low %v2581, %v2597
    %v2601 = vcombine.high %v2581, %v2597
    %2604 = vrot.lane.b32.xlu0 %v2531, 8
    %v2605 = vpop.permute.xlu0 %2604
    %2606 = vrot.lane.b32.xlu0 %v2599, 8
    %v2607 = vpop.permute.xlu0 %2606
    %2612 = vrot.lane.b32.xlu0 %v2532, 16
    %v2613 = vpop.permute.xlu0 %2612
    %2614 = vrot.lane.b32.xlu0 %v2600, 16
    %v2615 = vpop.permute.xlu0 %2614
    %2620 = vrot.lane.b32.xlu0 %v2533, 24
    %v2621 = vpop.permute.xlu0 %2620
    %2622 = vrot.lane.b32.xlu0 %v2601, 24
    %v2623 = vpop.permute.xlu0 %2622
    %v2626 = vsel %vm1049, %v2530, %v2605
    %v2627 = vsel %vm1049, %v2598, %v2607
    %vm2628 = vcmask 130048
    %v2629 = vsel %vm2628, %v2626, %v2613
    %v2630 = vsel %vm2628, %v2627, %v2615
    %vm2631 = vcmask 195584
    %v2632 = vsel %vm2631, %v2629, %v2621
    %v2633 = vsel %vm2631, %v2630, %v2623
    %v2634 = vld [vmem:[#allocation7] sm:$0xff]
    %v2635 = vld [vmem:[#allocation7 + $0x8] sm:$0xff]
    %v2636 = vld [vmem:[#allocation7 + $0x10] sm:$0xff]
    %v2637 = vld [vmem:[#allocation7 + $0x18] sm:$0xff]
    %v2638 = vld [vmem:[%s4] sm:$0x1]
    %v2640 = vlaneseq
    %v2641 = vshrl.u32 %v2640, 7
    %v2642 = vsub.s32 0, %v2641
    %v2643 = vrot.slane %v2638, %v2642
    %v2646 = vsel %vm75, %v2632, 0
    %v2649 = vsel %vm75, %v2633, 0
    %2651 = vmatprep.subr.mxu0 0.0
    %2652 = vmatpush1.msra.mxu0 %v2634
    %2653 = vmatprep.subr.mxu0 0.0
    %2654 = vmatpush1.msra.mxu0 %v2635
    %2655 = vmatprep.subr.mxu0 0.0
    %2656 = vmatpush1.msra.mxu0 %v2636
    %2657 = vmatprep.subr.mxu0 0.0
    %2658 = vmatpush1.msra.mxu0 %v2637
    %2659 = vmatprep.subr.mxu0 0.0
    %2660 = vmatpush1.msra.mxu0 0.0
    %2661 = vmatprep.subr.mxu0 0.0
    %2662 = vmatpush1.msra.mxu0 0.0
    %2663 = vmatprep.subr.mxu0 0.0
    %2664 = vmatpush1.msra.mxu0 0.0
    %2665 = vmatprep.subr.mxu0 0.0
    %2666 = vmatpush1.msra.mxu0 0.0
    %2667 = vmatprep.subr.mxu0 0.0
    %2668 = vmatpush1.msra.mxu0 0.0
    %2669 = vmatprep.subr.mxu0 0.0
    %2670 = vmatpush1.msra.mxu0 0.0
    %2671 = vmatprep.subr.mxu0 0.0
    %2672 = vmatpush1.msra.mxu0 0.0
    %2673 = vmatprep.subr.mxu0 0.0
    %2674 = vmatpush1.msra.mxu0 0.0
    %2675 = vmatprep.subr.mxu0 0.0
    %2676 = vmatpush1.msra.mxu0 0.0
    %2677 = vmatprep.subr.mxu0 0.0
    %2678 = vmatpush1.msra.mxu0 0.0
    %2679 = vmatprep.subr.mxu0 0.0
    %2680 = vmatpush1.msra.mxu0 0.0
    %2681 = vmatprep.subr.mxu0 0.0
    %2682 = vmatpush1.msra.mxu0 0.0
    %2683 = vmatprep.subr.mxu0 0.0
    %2684 = vmatpush1.msra.mxu0 0.0
    %2685 = vmatprep.subr.mxu0 0.0
    %2686 = vmatpush1.msra.mxu0 0.0
    %2687 = vmatprep.subr.mxu0 0.0
    %2688 = vmatpush1.msra.mxu0 0.0
    %2689 = vmatprep.subr.mxu0 0.0
    %2690 = vmatpush1.msra.mxu0 0.0
    %2691 = vmatprep.subr.mxu0 0.0
    %2692 = vmatpush1.msra.mxu0 0.0
    %2693 = vmatprep.subr.mxu0 0.0
    %2694 = vmatpush1.msra.mxu0 0.0
    %2695 = vmatprep.subr.mxu0 0.0
    %2696 = vmatpush1.msra.mxu0 0.0
    %2697 = vmatprep.subr.mxu0 0.0
    %2698 = vmatpush1.msra.mxu0 0.0
    %2699 = vmatprep.subr.mxu0 0.0
    %2700 = vmatpush1.msra.mxu0 0.0
    %2701 = vmatprep.subr.mxu0 0.0
    %2702 = vmatpush1.msra.mxu0 0.0
    %2703 = vmatprep.subr.mxu0 0.0
    %2704 = vmatpush1.msra.mxu0 0.0
    %2705 = vmatprep.subr.mxu0 0.0
    %2706 = vmatpush1.msra.mxu0 0.0
    %2707 = vmatprep.subr.mxu0 0.0
    %2708 = vmatpush1.msra.mxu0 0.0
    %2709 = vmatprep.subr.mxu0 0.0
    %2710 = vmatpush1.msra.mxu0 0.0
    %2711 = vmatprep.subr.mxu0 0.0
    %2712 = vmatpush1.msra.mxu0 0.0
    %2713 = vmatprep.subr.mxu0 0.0
    %2714 = vmatpush1.msra.mxu0 0.0
    %2715 = vmatprep.mubr.f32.mxu0 0.0
    %2716 = vmatmul.mubr.f32.gmra.mrb[0].mxu0 %v2646
    %v2717 = vpop.f32.mrb[0].mxu0
    %v2718 = vadd.f32 %v2643, %v2717
    %v2719 = vpop.f32.mrb[0].mxu0
    %2720 = vmatprep.mubr.f32.mxu0 0.0
    %2721 = vmatmul.mubr.f32.gmra.mrb[0].mxu0 %v2649
    %v2722 = vpop.f32.mrb[0].mxu0
    %v2723 = vadd.f32 %v2643, %v2722
    %v2724 = vpop.f32.mrb[0].mxu0
    %2725 = vdwg.mxu0
    %2726 = vst.msk [vmem:[#allocation8] sm:$0xff] %vm75, %v2718
    %2727 = vst.msk [vmem:[#allocation8 + $0x8] sm:$0xff] %vm75, %v2723
    // Predicated region
    $region34: #{tpu_custom_call.1} parent=1 // pred_check
      _
    $region35: #{tpu_custom_call.1} parent=1 // pred_check_branch
      %2729 = sbr.rel (0) target = $region37
    $region36: #{tpu_custom_call.1} parent=1 // pred_region
      %s2731 = ssub.s32 256, 256
      %2732 = vsyncadd [#allocation4], %s2731
      %s2733 = sshll.u32 [#allocation8], 4
      %s2734 = int_to_ptr.vmem [resolvable:$true] %s2733
      %2739 = dma.vmem_to_hbm [thread:$0]  %s2734, 256, %s5, [#allocation4], 128, 128, 8
    $region37: #{tpu_custom_call.1} parent=1 // pred_fallthru
      _
    // Predicated region
    $region38: #{tpu_custom_call.1} parent=1 // pred_check
      _
    $region39: #{tpu_custom_call.1} parent=1 // pred_check_branch
      %2741 = sbr.rel (0) target = $region41
    $region40: #{tpu_custom_call.1} parent=1 // pred_region
      %2742 = dma.done [#allocation4], 256
    $region41: #{tpu_custom_call.1} parent=1 // pred_fallthru
      _
    %2743 = vsyncpa [#allocation3], 1
    %2744 = vsyncpa [#allocation6], 1
    %2745 = vsyncpa [#allocation4], 1

</llo_original>
